<compile_context>
chip_gen: v7x
topology: tpu7x:2x2x1
jax: 0.10.0
libtpu: 0.0.40
codegen_flags: <defaults>
</compile_context>

<pallas_src>
import functools

import jax
import jax.numpy as jnp
from jax.experimental import pallas as pl
from jax.experimental.pallas import tpu as pltpu

_MIB = 1024 * 1024


def _round_up(x, mult):
    return ((x + mult - 1) // mult) * mult


def _vmem_capacity_bytes():
    """Physical VMEM of the local TPU generation (conservative 64 MiB fallback)."""
    try:
        info = pltpu.get_tpu_info()
        cap = int(getattr(info, "vmem_capacity_bytes", 0))
        if cap > 0:
            return cap
    except Exception:
        pass
    return 64 * _MIB


def _vmem_budget():
    cap = _vmem_capacity_bytes()
    # ~96 MiB on v5e/v6e (128 MiB physical), ~44 MiB on v7x (64 MiB physical)
    budget = max(24 * _MIB, min(int(cap * 0.75), cap - 20 * _MIB))
    return cap, budget


def _pipeline_vmem_bytes(tile_m, tile_k_lane, cout_pad):
    # BlockSpec pipeline buffers (double-buffered; bf16 A / B / out, lane-padded K).
    return (2 * tile_m * tile_k_lane * 2        # A tile
            + 2 * tile_k_lane * cout_pad * 2    # B tile
            + 2 * tile_m * cout_pad * 2         # output tile (bf16)
            + 4 * cout_pad * 4)                 # gamma / beta


def _fused_vmem_bytes(m_pad, tile_m, tile_k_lane, cout_pad, n_k):
    acc = tile_m * cout_pad * 4 if n_k > 1 else 8 * 128 * 4
    scratch = (m_pad * cout_pad * 2              # bf16 conv activation parked in VMEM
               + acc                             # f32 K accumulator
               + 2 * 8 * cout_pad * 4            # sum / ssq sublane partials
               + 2 * cout_pad * 4)               # scale / shift
    return scratch + _pipeline_vmem_bytes(tile_m, tile_k_lane, cout_pad)


def _fallback_vmem_bytes(tile_m, tile_k_lane, cout_pad, n_k):
    acc = tile_m * cout_pad * 4 if n_k > 1 else 8 * 128 * 4
    return acc + 2 * 8 * cout_pad * 4 + _pipeline_vmem_bytes(tile_m, tile_k_lane, cout_pad)


# -----------------------------------------------------------------------------
# Fused kernel: pass 0 = conv matmul (K-tiled) + BN batch-stat accumulation,
#               pass 1 = BN affine + ReLU from the bf16 VMEM-resident activation.
# -----------------------------------------------------------------------------
def _fused_conv_bn_relu_kernel(a_ref, b_ref, gamma_ref, beta_ref, out_ref,
                               conv_ref, acc_ref, sum_ref, ssq_ref,
                               scale_ref, shift_ref,
                               *, count, eps, apply_relu, tile_m, n_k):
    p = pl.program_id(0)          # 0: matmul + stats, 1: BN + ReLU
    i = pl.program_id(1)          # M-tile index
    kk = pl.program_id(2)         # K-tile (reduction) index
    row0 = pl.multiple_of(i * tile_m, tile_m)

    @pl.when((p == 0) & (i == 0) & (kk == 0))
    def _():
        sum_ref[...] = jnp.zeros_like(sum_ref)
        ssq_ref[...] = jnp.zeros_like(ssq_ref)

    def _finalize_tile(acc):
        # Park activation in VMEM as bf16 (halves scratch + vst/vld traffic); BN stats
        # stay f32 from the MXU accumulator.  Sublane-partial sums (VPU-only adds).
        conv_ref[pl.ds(row0, tile_m), :] = acc.astype(conv_ref.dtype)
        acc3 = acc.reshape(tile_m // 8, 8, acc.shape[-1])
        sum_ref[...] += jnp.sum(acc3, axis=0)
        ssq_ref[...] += jnp.sum(acc3 * acc3, axis=0)

    @pl.when(p == 0)
    def _():
        # conv hot path: bf16 operands, f32 accumulation on the MXU
        part = jnp.dot(a_ref[...], b_ref[...], preferred_element_type=jnp.float32)
        if n_k == 1:
            _finalize_tile(part)
        else:
            @pl.when(kk == 0)
            def _():
                acc_ref[...] = part

            @pl.when(kk > 0)
            def _():
                acc_ref[...] += part

            @pl.when(kk == n_k - 1)
            def _():
                _finalize_tile(acc_ref[...])

    @pl.when((p == 1) & (i == 0) & (kk == 0))
    def _():
        # finalize batch stats -> per-channel scale/shift (runs exactly once)
        ch_sum = jnp.sum(sum_ref[...], axis=0, keepdims=True)
        ch_ssq = jnp.sum(ssq_ref[...], axis=0, keepdims=True)
        inv_n = 1.0 / count
        mean = ch_sum * inv_n
        # TODO(synk): E[x^2]-E[x]^2 in f32 can cancel for very large M / large-mean
        # channels (clamped to 0 here); Welford/two-pass partials would be more robust.
        var = jnp.maximum(ch_ssq * inv_n - mean * mean, 0.0)
        inv_std = jax.lax.rsqrt(var + eps)
        scale = gamma_ref[...] * inv_std
        scale_ref[...] = scale
        shift_ref[...] = beta_ref[...] - mean * scale

    @pl.when((p == 1) & (kk == 0))
    def _():
        y = (conv_ref[pl.ds(row0, tile_m), :].astype(jnp.float32) * scale_ref[...]
             + shift_ref[...])
        if apply_relu:
            y = jnp.maximum(y, 0.0)
        out_ref[...] = y.astype(out_ref.dtype)


# -----------------------------------------------------------------------------
# Fallback kernels (activation too large for VMEM): bf16 intermediate in HBM.
# -----------------------------------------------------------------------------
def _conv_stats_kernel(a_ref, b_ref, out_ref, sum_ref, ssq_ref, acc_ref, *, n_k):
    i = pl.program_id(0)
    kk = pl.program_id(1)

    @pl.when((i == 0) & (kk == 0))
    def _():
        sum_ref[...] = jnp.zeros_like(sum_ref)
        ssq_ref[...] = jnp.zeros_like(ssq_ref)

    def _finalize_tile(acc):
        out_ref[...] = acc.astype(out_ref.dtype)
        acc3 = acc.reshape(acc.shape[0] // 8, 8, acc.shape[-1])
        sum_ref[...] += jnp.sum(acc3, axis=0)
        ssq_ref[...] += jnp.sum(acc3 * acc3, axis=0)

    part = jnp.dot(a_ref[...], b_ref[...], preferred_element_type=jnp.float32)
    if n_k == 1:
        _finalize_tile(part)
    else:
        @pl.when(kk == 0)
        def _():
            acc_ref[...] = part

        @pl.when(kk > 0)
        def _():
            acc_ref[...] += part

        @pl.when(kk == n_k - 1)
        def _():
            _finalize_tile(acc_ref[...])


def _bn_relu_kernel(x_ref, scale_ref, shift_ref, o_ref, *, apply_relu):
    # elementwise math kept in f32 (v5e has no bf16 VPU); cast only at the store
    y = x_ref[...].astype(jnp.float32) * scale_ref[...] + shift_ref[...]
    if apply_relu:
        y = jnp.maximum(y, 0.0)
    o_ref[...] = y.astype(o_ref.dtype)


# -----------------------------------------------------------------------------
# Public wrapper: NCHW in / NCHW out, forward pass of ConvBNReLU
# (groups=1, bias=False, bn_type='bn'/'SyncBN' in training mode).
# -----------------------------------------------------------------------------
def conv_bn_relu(x_nchw, weight, gamma, beta, *, stride, padding, dilation=1,
                 groups=1, relu_type="relu", eps=1e-5, tile_m=1024):
    assert groups == 1, "groups>1 not implemented"
    assert relu_type in ("relu", "none")

    n, cin, h, w = x_nchw.shape
    cout, cin_w, kh, kw = weight.shape
    assert cin_w == cin

    oh = (h + 2 * padding - dilation * (kh - 1) - 1) // stride + 1
    ow = (w + 2 * padding - dilation * (kw - 1) - 1) // stride + 1
    m = n * oh * ow
    k = kh * kw * cin

    # ---- glue: NCHW -> NHWC (bf16), pad, im2col built once in bf16 -----------
    # TODO(synk): tap-reduction grid (no HBM im2col) + NHWC-native interface would
    # remove the ~KH*KW input inflation and both wrapper transposes.
    x = jnp.transpose(x_nchw, (0, 2, 3, 1)).astype(jnp.bfloat16)       # [N,H,W,Cin]
    if kh == 1 and kw == 1 and padding == 0 and stride == 1:
        a = x.reshape(m, k)                                            # 1x1 conv: no im2col
    else:
        xp = jnp.pad(x, ((0, 0), (padding, padding), (padding, padding), (0, 0)))
        patches = []
        for ki in range(kh):
            for kj in range(kw):
                hs, ws = ki * dilation, kj * dilation
                patches.append(xp[:, hs:hs + stride * oh:stride,
                                   ws:ws + stride * ow:stride, :])     # [N,OH,OW,Cin]
        a = jnp.stack(patches, axis=3).reshape(m, k)                   # [M, K] bf16

    # ---- K (reduction) tiling -------------------------------------------------
    if k <= 2048:
        tile_k, k_pad, grid_k = k, k, 1
    else:
        tile_k = 512
        k_pad = _round_up(k, tile_k)
        grid_k = k_pad // tile_k
    tile_k_lane = _round_up(tile_k, 128)         # VMEM lane padding of the K axis

    # ---- Cout lane padding (unmasked, lane-dense output stores) ----------------
    cout_pad = _round_up(cout, 128)

    # ---- generation-aware VMEM budget & M tiling -------------------------------
    cap, budget = _vmem_budget()
    tile_m = max(16, min(tile_m, _round_up(m, 16)))     # bf16 sublane pack: x16
    tile_m = _round_up(tile_m, 16)
    while tile_m > 256 and _fused_vmem_bytes(_round_up(m, tile_m), tile_m,
                                             tile_k_lane, cout_pad, grid_k) > budget:
        tile_m = _round_up(tile_m // 2, 16)
    m_pad = _round_up(m, tile_m)
    grid_m = m_pad // tile_m

    est = _fused_vmem_bytes(m_pad, tile_m, tile_k_lane, cout_pad, grid_k)
    use_fused = est <= budget
    if not use_fused:
        while tile_m > 256 and _fallback_vmem_bytes(tile_m, tile_k_lane,
                                                    cout_pad, grid_k) > budget:
            tile_m = _round_up(tile_m // 2, 16)
        m_pad = _round_up(m, tile_m)
        grid_m = m_pad // tile_m

    if m_pad != m or k_pad != k:
        a = jnp.pad(a, ((0, m_pad - m), (0, k_pad - k)))   # zero rows/cols: 0 in stats

    # weight [Cout,Cin,KH,KW] -> [KH,KW,Cin,Cout] -> [K_pad, Cout_pad] bf16
    b = jnp.transpose(weight, (2, 3, 1, 0)).reshape(k, cout).astype(jnp.float32)
    b = jnp.pad(b, ((0, k_pad - k), (0, cout_pad - cout))).astype(jnp.bfloat16)
    gamma_p = jnp.pad(gamma.astype(jnp.float32), (0, cout_pad - cout)).reshape(1, cout_pad)
    beta_p = jnp.pad(beta.astype(jnp.float32), (0, cout_pad - cout)).reshape(1, cout_pad)

    count = float(m)                 # BN training: biased variance over true N*OH*OW
    apply_relu = (relu_type == "relu")
    acc_scratch = (pltpu.VMEM((tile_m, cout_pad), jnp.float32) if grid_k > 1
                   else pltpu.VMEM((8, 128), jnp.float32))   # dummy when K untiled
    gm, gk = grid_m, grid_k

    if use_fused:
        # ---- fused path: single pallas_call, 2-pass grid, no HBM round-trip ----
        vmem_limit = int(min(cap - 8 * _MIB, max(32 * _MIB, est + 12 * _MIB)))
        kernel = functools.partial(_fused_conv_bn_relu_kernel,
                                   count=count, eps=float(eps),
                                   apply_relu=apply_relu, tile_m=tile_m, n_k=grid_k)
        out_flat = pl.pallas_call(
            kernel,
            out_shape=jax.ShapeDtypeStruct((m_pad, cout_pad), jnp.bfloat16),
            grid_spec=pltpu.PrefetchScalarGridSpec(
                num_scalar_prefetch=0,
                grid=(2, gm, gk),
                in_specs=[
                    # A/B only needed in pass 0 -> freeze on their last pass-0 block
                    # during pass 1 so no extra DMAs are issued.
                    pl.BlockSpec((tile_m, tile_k),
                                 lambda p, i, kk: (i * (1 - p) + (gm - 1) * p,
                                                   kk * (1 - p) + (gk - 1) * p)),
                    pl.BlockSpec((tile_k, cout_pad),
                                 lambda p, i, kk: (kk * (1 - p) + (gk - 1) * p, 0)),
                    pl.BlockSpec((1, cout_pad), lambda p, i, kk: (0, 0)),
                    pl.BlockSpec((1, cout_pad), lambda p, i, kk: (0, 0)),
                ],
                # output only written in pass 1 -> parked on block 0 during pass 0
                out_specs=pl.BlockSpec((tile_m, cout_pad), lambda p, i, kk: (i * p, 0)),
                scratch_shapes=[
                    pltpu.VMEM((m_pad, cout_pad), jnp.bfloat16),  # conv activation (bf16)
                    acc_scratch,                                  # f32 K accumulator
                    pltpu.VMEM((8, cout_pad), jnp.float32),       # sum partials
                    pltpu.VMEM((8, cout_pad), jnp.float32),       # ssq partials
                    pltpu.VMEM((1, cout_pad), jnp.float32),       # scale
                    pltpu.VMEM((1, cout_pad), jnp.float32),       # shift
                ]),
            compiler_params=pltpu.CompilerParams(
                dimension_semantics=("arbitrary", "arbitrary", "arbitrary"),
                vmem_limit_bytes=vmem_limit),
        )(a, b, gamma_p, beta_p)
    else:
        # ---- fallback: two kernels, bf16 intermediate activation in HBM --------
        fb_est = _fallback_vmem_bytes(tile_m, tile_k_lane, cout_pad, grid_k)
        vmem_limit = int(min(cap - 8 * _MIB, max(32 * _MIB, fb_est + 12 * _MIB)))
        conv_out, sum8, ssq8 = pl.pallas_call(
            functools.partial(_conv_stats_kernel, n_k=grid_k),
            out_shape=(
                jax.ShapeDtypeStruct((m_pad, cout_pad), jnp.bfloat16),
                jax.ShapeDtypeStruct((8, cout_pad), jnp.float32),
                jax.ShapeDtypeStruct((8, cout_pad), jnp.float32),
            ),
            grid_spec=pltpu.PrefetchScalarGridSpec(
                num_scalar_prefetch=0,
                grid=(gm, gk),
                in_specs=[
                    pl.BlockSpec((tile_m, tile_k), lambda i, kk: (i, kk)),
                    pl.BlockSpec((tile_k, cout_pad), lambda i, kk: (kk, 0)),
                ],
                out_specs=[
                    pl.BlockSpec((tile_m, cout_pad), lambda i, kk: (i, 0)),
                    pl.BlockSpec((8, cout_pad), lambda i, kk: (0, 0)),
                    pl.BlockSpec((8, cout_pad), lambda i, kk: (0, 0)),
                ],
                scratch_shapes=[acc_scratch]),
            compiler_params=pltpu.CompilerParams(
                dimension_semantics=("arbitrary", "arbitrary"),
                vmem_limit_bytes=vmem_limit),
        )(a, b)

        ch_sum = jnp.sum(sum8, axis=0, keepdims=True)
        ch_ssq = jnp.sum(ssq8, axis=0, keepdims=True)
        mean = ch_sum / count
        var = jnp.maximum(ch_ssq / count - mean * mean, 0.0)
        inv_std = jax.lax.rsqrt(var + eps)
        scale = gamma_p * inv_std
        shift = beta_p - mean * scale

        out_flat = pl.pallas_call(
            functools.partial(_bn_relu_kernel, apply_relu=apply_relu),
            out_shape=jax.ShapeDtypeStruct((m_pad, cout_pad), jnp.bfloat16),
            grid_spec=pltpu.PrefetchScalarGridSpec(
                num_scalar_prefetch=0,
                grid=(gm,),
                in_specs=[
                    pl.BlockSpec((tile_m, cout_pad), lambda i: (i, 0)),
                    pl.BlockSpec((1, cout_pad), lambda i: (0, 0)),
                    pl.BlockSpec((1, cout_pad), lambda i: (0, 0)),
                ],
                out_specs=pl.BlockSpec((tile_m, cout_pad), lambda i: (i, 0))),
            compiler_params=pltpu.CompilerParams(
                dimension_semantics=("parallel",),
                vmem_limit_bytes=int(min(cap - 8 * _MIB, 64 * _MIB))),
        )(conv_out, scale, shift)

    # ---- glue: drop padding, back to NCHW, f32 to match the module -------------
    out = out_flat[:m, :cout].reshape(n, oh, ow, cout).astype(jnp.float32)
    return jnp.transpose(out, (0, 3, 1, 2))                            # [N, Cout, OH, OW]


if __name__ == "__main__":
    # ConvBNReLU(input_size, in_ch=4, out_ch=8, k=3, stride=1, pad=1,
    #            bias=False, relu_type='relu', bn_type='bn')
    N, CIN, H, W = 2, 4, 16, 16
    COUT, KSZ, STRIDE, PAD = 8, 3, 1, 1

    key = jax.random.PRNGKey(0)
    kx, kw_ = jax.random.split(key)

    x = jax.random.normal(kx, (N, CIN, H, W), dtype=jnp.float32)
    # kaiming_normal_(mode='fan_out', nonlinearity='relu'): std = sqrt(2 / (Cout*k*k))
    fan_out = COUT * KSZ * KSZ
    weight = jax.random.normal(kw_, (COUT, CIN, KSZ, KSZ), dtype=jnp.float32) * jnp.sqrt(2.0 / fan_out)
    gamma = jnp.ones((COUT,), dtype=jnp.float32)   # BN weight
    beta = jnp.zeros((COUT,), dtype=jnp.float32)   # BN bias

    out = conv_bn_relu(x, weight, gamma, beta,
                       stride=STRIDE, padding=PAD, relu_type="relu")
    out = jax.block_until_ready(out)
    assert out.shape == (N, COUT, H, W)

    # Reference (same bf16 conv operands, f32 accumulation) to sanity-check the kernel.
    ref_conv = jax.lax.conv_general_dilated(
        x.astype(jnp.bfloat16), weight.astype(jnp.bfloat16),
        window_strides=(STRIDE, STRIDE), padding=[(PAD, PAD), (PAD, PAD)],
        dimension_numbers=("NCHW", "OIHW", "NCHW"),
        preferred_element_type=jnp.float32)
    mean = jnp.mean(ref_conv, axis=(0, 2, 3), keepdims=True)
    var = jnp.mean(jnp.square(ref_conv - mean), axis=(0, 2, 3), keepdims=True)
    ref = jnp.maximum((ref_conv - mean) * jax.lax.rsqrt(var + 1e-5)
                      * gamma.reshape(1, -1, 1, 1) + beta.reshape(1, -1, 1, 1), 0.0)
    err = float(jnp.max(jnp.abs(out - ref)))
    assert err < 5e-2, f"mismatch vs reference: {err}"
    assert bool(jnp.all(out >= 0.0))  # ReLU
    print("KERNEL_OK")
</pallas_src>

<mosaic_0001>
module attributes {stable_mosaic.version = 11 : i64} {
  func.func @_fused_conv_bn_relu_kernel(%arg0: i32, %arg1: i32, %arg2: i32, %arg3: memref<512x36xbf16, #tpu.memory_space<vmem>>, %arg4: memref<36x128xbf16, #tpu.memory_space<vmem>>, %arg5: memref<1x128xf32, #tpu.memory_space<vmem>>, %arg6: memref<1x128xf32, #tpu.memory_space<vmem>>, %arg7: memref<512x128xbf16, #tpu.memory_space<vmem>>, %arg8: memref<512x128xbf16, #tpu.memory_space<vmem>>, %arg9: memref<8x128xf32, #tpu.memory_space<vmem>>, %arg10: memref<8x128xf32, #tpu.memory_space<vmem>>, %arg11: memref<8x128xf32, #tpu.memory_space<vmem>>, %arg12: memref<1x128xf32, #tpu.memory_space<vmem>>, %arg13: memref<1x128xf32, #tpu.memory_space<vmem>>) attributes {dimension_semantics = [#tpu.dimension_semantics<arbitrary>, #tpu.dimension_semantics<arbitrary>, #tpu.dimension_semantics<arbitrary>], iteration_bounds = array<i64: 2, 1, 1>, scalar_prefetch = 0 : i64, scratch_operands = 6 : i64, tpu.core_type = #tpu.core_type<tc>, window_params = [{transform_indices = @transform_0, window_bounds = array<i64: 512, 36>}, {transform_indices = @transform_1, window_bounds = array<i64: 36, 128>}, {pipeline_mode = #tpu.pipeline_mode<synchronous>, transform_indices = @transform_2, window_bounds = array<i64: 1, 128>}, {pipeline_mode = #tpu.pipeline_mode<synchronous>, transform_indices = @transform_3, window_bounds = array<i64: 1, 128>}, {transform_indices = @transform_4, window_bounds = array<i64: 512, 128>}]} {
    %c512_i32 = arith.constant 512 : i32
    %0 = arith.muli %arg1, %c512_i32 : i32
    %1 = tpu.assume_multiple %0, 512 : i32
    %c0_i32 = arith.constant 0 : i32
    %2 = arith.cmpi eq, %arg0, %c0_i32 : i32
    %c0_i32_0 = arith.constant 0 : i32
    %3 = arith.cmpi eq, %arg1, %c0_i32_0 : i32
    %4 = arith.andi %2, %3 : i1
    %c0_i32_1 = arith.constant 0 : i32
    %5 = arith.cmpi eq, %arg2, %c0_i32_1 : i32
    %6 = arith.andi %4, %5 : i1
    %7 = arith.extui %6 : i1 to i32
    %c0_i32_2 = arith.constant 0 : i32
    %8 = arith.cmpi ne, %7, %c0_i32_2 : i32
    scf.if %8 {
      %cst = arith.constant 0.000000e+00 : f32
      %24 = vector.broadcast %cst : f32 to vector<8x128xf32>
      %c0 = arith.constant 0 : index
      %c0_11 = arith.constant 0 : index
      %25 = vector.load %arg10[%c0, %c0_11] : memref<8x128xf32, #tpu.memory_space<vmem>>, vector<8x128xf32>
      tpu.vector_store %arg10[%c0, %c0_11], %24 {strides = array<i32>} : memref<8x128xf32, #tpu.memory_space<vmem>>, vector<8x128xf32>,
      %cst_12 = arith.constant 0.000000e+00 : f32
      %26 = vector.broadcast %cst_12 : f32 to vector<8x128xf32>
      %c0_13 = arith.constant 0 : index
      %c0_14 = arith.constant 0 : index
      %27 = vector.load %arg11[%c0_13, %c0_14] : memref<8x128xf32, #tpu.memory_space<vmem>>, vector<8x128xf32>
      tpu.vector_store %arg11[%c0_13, %c0_14], %26 {strides = array<i32>} : memref<8x128xf32, #tpu.memory_space<vmem>>, vector<8x128xf32>,
    } else {
    }
    %c0_i32_3 = arith.constant 0 : i32
    %9 = arith.cmpi eq, %arg0, %c0_i32_3 : i32
    %10 = arith.extui %9 : i1 to i32
    %c0_i32_4 = arith.constant 0 : i32
    %11 = arith.cmpi ne, %10, %c0_i32_4 : i32
    scf.if %11 {
      %c0 = arith.constant 0 : index
      %c0_11 = arith.constant 0 : index
      %24 = vector.load %arg3[%c0, %c0_11] : memref<512x36xbf16, #tpu.memory_space<vmem>>, vector<512x36xbf16>
      %c0_12 = arith.constant 0 : index
      %c0_13 = arith.constant 0 : index
      %25 = vector.load %arg4[%c0_12, %c0_13] : memref<36x128xbf16, #tpu.memory_space<vmem>>, vector<36x128xbf16>
      %cst = arith.constant dense<0.000000e+00> : vector<512x128xf32>
      %26 = tpu.matmul %24, %25, %cst {dimension_numbers = #tpu.dot_dimension_numbers<[1], [0], [0], [1], [0, 0, 1, 1], [], []>} : vector<512x36xbf16>, vector<36x128xbf16>, vector<512x128xf32> -> vector<512x128xf32>
      %27 = arith.truncf %26 : vector<512x128xf32> to vector<512x128xbf16>
      %28 = arith.index_cast %1 : i32 to index
      %c0_14 = arith.constant 0 : index
      %29 = vector.load %arg8[%28, %c0_14] : memref<512x128xbf16, #tpu.memory_space<vmem>>, vector<512x128xbf16>
      tpu.vector_store %arg8[%28, %c0_14], %27 {strides = array<i32>} : memref<512x128xbf16, #tpu.memory_space<vmem>>, vector<512x128xbf16>,
      %30 = vector.shape_cast %26 : vector<512x128xf32> to vector<64x8x128xf32>
      %c0_15 = arith.constant 0 : index
      %c0_16 = arith.constant 0 : index
      %31 = vector.load %arg10[%c0_15, %c0_16] : memref<8x128xf32, #tpu.memory_space<vmem>>, vector<8x128xf32>
      %cst_17 = arith.constant dense<0.000000e+00> : vector<8x128xf32>
      %32 = vector.multi_reduction <add>, %30, %cst_17 [0] : vector<64x8x128xf32> to vector<8x128xf32>
      %33 = arith.addf %31, %32 : vector<8x128xf32>
      %c0_18 = arith.constant 0 : index
      %c0_19 = arith.constant 0 : index
      %34 = vector.load %arg10[%c0_18, %c0_19] : memref<8x128xf32, #tpu.memory_space<vmem>>, vector<8x128xf32>
      tpu.vector_store %arg10[%c0_18, %c0_19], %33 {strides = array<i32>} : memref<8x128xf32, #tpu.memory_space<vmem>>, vector<8x128xf32>,
      %c0_20 = arith.constant 0 : index
      %c0_21 = arith.constant 0 : index
      %35 = vector.load %arg11[%c0_20, %c0_21] : memref<8x128xf32, #tpu.memory_space<vmem>>, vector<8x128xf32>
      %36 = arith.mulf %30, %30 : vector<64x8x128xf32>
      %cst_22 = arith.constant dense<0.000000e+00> : vector<8x128xf32>
      %37 = vector.multi_reduction <add>, %36, %cst_22 [0] : vector<64x8x128xf32> to vector<8x128xf32>
      %38 = arith.addf %35, %37 : vector<8x128xf32>
      %c0_23 = arith.constant 0 : index
      %c0_24 = arith.constant 0 : index
      %39 = vector.load %arg11[%c0_23, %c0_24] : memref<8x128xf32, #tpu.memory_space<vmem>>, vector<8x128xf32>
      tpu.vector_store %arg11[%c0_23, %c0_24], %38 {strides = array<i32>} : memref<8x128xf32, #tpu.memory_space<vmem>>, vector<8x128xf32>,
    } else {
    }
    %c1_i32 = arith.constant 1 : i32
    %12 = arith.cmpi eq, %arg0, %c1_i32 : i32
    %c0_i32_5 = arith.constant 0 : i32
    %13 = arith.cmpi eq, %arg1, %c0_i32_5 : i32
    %14 = arith.andi %12, %13 : i1
    %c0_i32_6 = arith.constant 0 : i32
    %15 = arith.cmpi eq, %arg2, %c0_i32_6 : i32
    %16 = arith.andi %14, %15 : i1
    %17 = arith.extui %16 : i1 to i32
    %c0_i32_7 = arith.constant 0 : i32
    %18 = arith.cmpi ne, %17, %c0_i32_7 : i32
    scf.if %18 {
      %c0 = arith.constant 0 : index
      %c0_11 = arith.constant 0 : index
      %24 = vector.load %arg10[%c0, %c0_11] : memref<8x128xf32, #tpu.memory_space<vmem>>, vector<8x128xf32>
      %cst = arith.constant dense<0.000000e+00> : vector<128xf32>
      %25 = vector.multi_reduction <add>, %24, %cst [0] : vector<8x128xf32> to vector<128xf32>
      %26 = vector.shape_cast %25 : vector<128xf32> to vector<1x128xf32>
      %c0_12 = arith.constant 0 : index
      %c0_13 = arith.constant 0 : index
      %27 = vector.load %arg11[%c0_12, %c0_13] : memref<8x128xf32, #tpu.memory_space<vmem>>, vector<8x128xf32>
      %cst_14 = arith.constant dense<0.000000e+00> : vector<128xf32>
      %28 = vector.multi_reduction <add>, %27, %cst_14 [0] : vector<8x128xf32> to vector<128xf32>
      %29 = vector.shape_cast %28 : vector<128xf32> to vector<1x128xf32>
      %cst_15 = arith.constant 0.001953125 : f32
      %30 = vector.broadcast %cst_15 : f32 to vector<1x128xf32>
      %31 = arith.mulf %26, %30 : vector<1x128xf32>
      %cst_16 = arith.constant 0.001953125 : f32
      %32 = vector.broadcast %cst_16 : f32 to vector<1x128xf32>
      %33 = arith.mulf %29, %32 : vector<1x128xf32>
      %34 = arith.mulf %31, %31 : vector<1x128xf32>
      %35 = arith.subf %33, %34 : vector<1x128xf32>
      %cst_17 = arith.constant 0.000000e+00 : f32
      %36 = vector.broadcast %cst_17 : f32 to vector<1x128xf32>
      %37 = arith.maximumf %35, %36 : vector<1x128xf32>
      %cst_18 = arith.constant 9.99999974E-6 : f32
      %38 = vector.broadcast %cst_18 : f32 to vector<1x128xf32>
      %39 = arith.addf %37, %38 : vector<1x128xf32>
      %40 = math.rsqrt %39 : vector<1x128xf32>
      %c0_19 = arith.constant 0 : index
      %c0_20 = arith.constant 0 : index
      %41 = vector.load %arg5[%c0_19, %c0_20] : memref<1x128xf32, #tpu.memory_space<vmem>>, vector<1x128xf32>
      %42 = arith.mulf %41, %40 : vector<1x128xf32>
      %c0_21 = arith.constant 0 : index
      %c0_22 = arith.constant 0 : index
      %43 = vector.load %arg12[%c0_21, %c0_22] : memref<1x128xf32, #tpu.memory_space<vmem>>, vector<1x128xf32>
      tpu.vector_store %arg12[%c0_21, %c0_22], %42 {strides = array<i32>} : memref<1x128xf32, #tpu.memory_space<vmem>>, vector<1x128xf32>,
      %c0_23 = arith.constant 0 : index
      %c0_24 = arith.constant 0 : index
      %44 = vector.load %arg6[%c0_23, %c0_24] : memref<1x128xf32, #tpu.memory_space<vmem>>, vector<1x128xf32>
      %45 = arith.mulf %31, %42 : vector<1x128xf32>
      %46 = arith.subf %44, %45 : vector<1x128xf32>
      %c0_25 = arith.constant 0 : index
      %c0_26 = arith.constant 0 : index
      %47 = vector.load %arg13[%c0_25, %c0_26] : memref<1x128xf32, #tpu.memory_space<vmem>>, vector<1x128xf32>
      tpu.vector_store %arg13[%c0_25, %c0_26], %46 {strides = array<i32>} : memref<1x128xf32, #tpu.memory_space<vmem>>, vector<1x128xf32>,
    } else {
    }
    %c1_i32_8 = arith.constant 1 : i32
    %19 = arith.cmpi eq, %arg0, %c1_i32_8 : i32
    %c0_i32_9 = arith.constant 0 : i32
    %20 = arith.cmpi eq, %arg2, %c0_i32_9 : i32
    %21 = arith.andi %19, %20 : i1
    %22 = arith.extui %21 : i1 to i32
    %c0_i32_10 = arith.constant 0 : i32
    %23 = arith.cmpi ne, %22, %c0_i32_10 : i32
    scf.if %23 {
      %24 = arith.index_cast %1 : i32 to index
      %c0 = arith.constant 0 : index
      %25 = vector.load %arg8[%24, %c0] : memref<512x128xbf16, #tpu.memory_space<vmem>>, vector<512x128xbf16>
      %26 = arith.extf %25 : vector<512x128xbf16> to vector<512x128xf32>
      %c0_11 = arith.constant 0 : index
      %c0_12 = arith.constant 0 : index
      %27 = vector.load %arg12[%c0_11, %c0_12] : memref<1x128xf32, #tpu.memory_space<vmem>>, vector<1x128xf32>
      %28 = vector.broadcast %27 : vector<1x128xf32> to vector<512x128xf32>
      %29 = arith.mulf %26, %28 : vector<512x128xf32>
      %c0_13 = arith.constant 0 : index
      %c0_14 = arith.constant 0 : index
      %30 = vector.load %arg13[%c0_13, %c0_14] : memref<1x128xf32, #tpu.memory_space<vmem>>, vector<1x128xf32>
      %31 = vector.broadcast %30 : vector<1x128xf32> to vector<512x128xf32>
      %32 = arith.addf %29, %31 : vector<512x128xf32>
      %cst = arith.constant 0.000000e+00 : f32
      %33 = vector.broadcast %cst : f32 to vector<512x128xf32>
      %34 = arith.maximumf %32, %33 : vector<512x128xf32>
      %35 = arith.truncf %34 : vector<512x128xf32> to vector<512x128xbf16>
      %c0_15 = arith.constant 0 : index
      %c0_16 = arith.constant 0 : index
      %36 = vector.load %arg7[%c0_15, %c0_16] : memref<512x128xbf16, #tpu.memory_space<vmem>>, vector<512x128xbf16>
      tpu.vector_store %arg7[%c0_15, %c0_16], %35 {strides = array<i32>} : memref<512x128xbf16, #tpu.memory_space<vmem>>, vector<512x128xbf16>,
    } else {
    }
    return
  }
  func.func @transform_0(%arg0: i32, %arg1: i32, %arg2: i32) -> (i32, i32) {
    %c1_i32 = arith.constant 1 : i32
    %0 = arith.subi %c1_i32, %arg0 : i32
    %1 = arith.muli %arg1, %0 : i32
    %c0_i32 = arith.constant 0 : i32
    %2 = arith.muli %c0_i32, %arg0 : i32
    %3 = arith.addi %1, %2 : i32
    %c1_i32_0 = arith.constant 1 : i32
    %4 = arith.subi %c1_i32_0, %arg0 : i32
    %5 = arith.muli %arg2, %4 : i32
    %c0_i32_1 = arith.constant 0 : i32
    %6 = arith.muli %c0_i32_1, %arg0 : i32
    %7 = arith.addi %5, %6 : i32
    %c0_i32_2 = arith.constant 0 : i32
    return %3, %7 : i32, i32
  }
  func.func @transform_1(%arg0: i32, %arg1: i32, %arg2: i32) -> (i32, i32) {
    %c1_i32 = arith.constant 1 : i32
    %0 = arith.subi %c1_i32, %arg0 : i32
    %1 = arith.muli %arg2, %0 : i32
    %c0_i32 = arith.constant 0 : i32
    %2 = arith.muli %c0_i32, %arg0 : i32
    %3 = arith.addi %1, %2 : i32
    %c0_i32_0 = arith.constant 0 : i32
    %c0_i32_1 = arith.constant 0 : i32
    return %3, %c0_i32_0 : i32, i32
  }
  func.func @transform_2(%arg0: i32, %arg1: i32, %arg2: i32) -> (i32, i32) {
    %c0_i32 = arith.constant 0 : i32
    %c0_i32_0 = arith.constant 0 : i32
    %c0_i32_1 = arith.constant 0 : i32
    return %c0_i32, %c0_i32_0 : i32, i32
  }
  func.func @transform_3(%arg0: i32, %arg1: i32, %arg2: i32) -> (i32, i32) {
    %c0_i32 = arith.constant 0 : i32
    %c0_i32_0 = arith.constant 0 : i32
    %c0_i32_1 = arith.constant 0 : i32
    return %c0_i32, %c0_i32_0 : i32, i32
  }
  func.func @transform_4(%arg0: i32, %arg1: i32, %arg2: i32) -> (i32, i32) {
    %0 = arith.muli %arg1, %arg0 : i32
    %c0_i32 = arith.constant 0 : i32
    %c0_i32_0 = arith.constant 0 : i32
    return %0, %c0_i32 : i32, i32
  }
}

</mosaic_0001>

<llo_original>
// kernel: tpu_custom_call.1
$region0: #{tpu_custom_call.1}
  #allocation0 [shape = 'u32[]', space=smem, size = 0x4, offset = 0x4, fixed_abs, tag = 'smem constant byte address 0x4 - core index']
  #allocation1 [shape = 'u32[144,128]{1,0:T(1,128)}', space=vmem, size = 0x12000, scoped, tag = 'internal scratch']
  #allocation2 [shape = 'bf16[512,128]{1,0:T(16,128)(2,1)}', space=vmem, size = 0x20000, scoped, tag = 'scratch operand']
  #allocation3 [shape = 'f32[8,128]{1,0:T(8,128)}', space=vmem, size = 0x1000, scoped, tag = 'scratch operand']
  #allocation4 [shape = 'f32[8,128]{1,0:T(8,128)}', space=vmem, size = 0x1000, scoped, tag = 'scratch operand']
  #allocation5 [shape = 'f32[8,128]{1,0:T(8,128)}', space=vmem, size = 0x1000, scoped, tag = 'scratch operand']
  #allocation6 [shape = 'f32[1,128]{1,0:T(1,128)}', space=vmem, size = 0x200, scoped, tag = 'scratch operand']
  #allocation7 [shape = 'f32[1,128]{1,0:T(1,128)}', space=vmem, size = 0x200, scoped, tag = 'scratch operand']
  %s0 = inlined_call_operand.vmem [shape: bf16[512,36], index: 0, kind: input, shape index: {}]
  %s1 = inlined_call_operand.vmem [shape: bf16[36,128], index: 1, kind: input, shape index: {}]
  %s2 = inlined_call_operand.vmem [shape: f32[1,128], index: 2, kind: input, shape index: {}]
  %s3 = inlined_call_operand.vmem [shape: f32[1,128], index: 3, kind: input, shape index: {}]
  %s4 = inlined_call_operand.hbm [shape: bf16[512,128], index: 4, kind: output, shape index: {}]
  %s5 = sld [smem:[#allocation0]]
  $region65: #{tpu_custom_call.1} parent=0
    _
  %s7 = ssub.s32 1, %s5
  %s8 = scalar_select 0, %s7, %s5
  $region1: #{tpu_custom_call.1} parent=0
    #allocation8 [shape = 'u8[262144]{0}', space=vmem, size = 0x40000, scoped, tag = 'output window, operand 0']
    #allocation9 [shape = 's32[2]{0}', space=sflag, size = 0x8, scoped, tag = 'scoped memory for tpu_custom_call.1']
    %9 = vsyncpa [#allocation9], 0
    %s10 = scalar_lea.sflag [#allocation9], 1
    %11 = vsyncpa %s10, 0
    loop: start=0, step=1, limit=4
    $region2: #{tpu_custom_call.1} parent=1 // loop_pre_header
      _
    $region3: #{tpu_custom_call.1} parent=1 // loop_header
      %s13 = sphi 0, %s17
      %p14 = scmp.ge.s32.totalorder %s13, 4
      %s20 = sphi 0, %s39
      %s21 = sphi 0, %s35
      %s22 = sphi 0, %s31
      %s23 = sphi 0, %s20
      %s24 = sphi 0, %s21
      %s25 = sphi 0, %s22
      %s26 = sphi 0, %s23
      %s27 = sphi 0, %s24
      %s28 = sphi 0, %s25
      %s50 = sphi 0, %s52
      %s53 = sphi 0, %s50
      %s54 = sphi 0, %s53
      %s70 = sphi 0, %s54
      %s80 = sphi 0, %s82
      %s83 = sphi 0, %s80
      %s84 = sphi 0, %s83
      %s100 = sphi 0, %s84
      %s104 = sphi 0, %s104
      %s106 = sphi 0, %s104
      %s107 = sphi 0, %s106
      %s121 = sphi 0, %s107
      %s125 = sphi 0, %s125
      %s127 = sphi 0, %s125
      %s128 = sphi 0, %s127
      %s142 = sphi 0, %s128
      %s150 = sphi 0, %s152
      %s153 = sphi 0, %s150
      %s154 = sphi 0, %s153
      %s170 = sphi 0, %s154
    $region4: #{tpu_custom_call.1} parent=1 // loop_header_branch
      %16 = sbr.rel (%p14) target = $region8
    $region5: #{tpu_custom_call.1} parent=1 // loop_body
      %s18 = ssub.s32 %s13, 1
      %s19 = ssub.s32 %s13, 2
      %s29 = sadd.s32 1, %s22
      %p30 = scmp.ge.s32.totalorder %s29, 1
      %s31 = scalar_select %p30, 0, %s29
      %s32 = sadd.s32 1, %s21
      %s33 = scalar_select %p30, %s32, %s21
      %p34 = scmp.ge.s32.totalorder %s33, 1
      %s35 = scalar_select %p34, 0, %s33
      %s36 = sadd.s32 1, %s20
      %s37 = scalar_select %p34, %s36, %s20
      %p38 = scmp.ge.s32.totalorder %s37, 2
      %s39 = scalar_select %p38, 0, %s37
      %s40 = ssub.s32 1, %s20
      %s41 = smul.u32 %s21, %s40
      %s42 = smul.u32 %s22, %s40
      %s43 = ssub.s32 1, %s39
      %s44 = smul.u32 %s35, %s43
      %s45 = smul.u32 %s31, %s43
      %s46 = ssub.s32 %s41, %s44
      %s47 = ssub.s32 %s42, %s45
      %s48 = sor.u32 %s46, %s47
      %p49 = scmp.eq.s32.totalorder %s48, 0
      %s51 = sadd.s32 %s50, 1
      %s52 = scalar_select %p49, %s50, %s51
      %p55 = pneg %p49
      %p56 = scmp.eq.s32.totalorder %s13, 1
      %p57 = por %p55, %p56
      %p58 = scmp.ne.s32.totalorder %s50, %s53
      %p59 = scmp.eq.s32.totalorder %s13, 0
      %p60 = por %p58, %p59
      %p61 = scmp.ne.s32.totalorder %s50, %s53
      %p62 = scmp.eq.s32.totalorder %s18, 1
      %p63 = por %p61, %p62
      %p64 = scmp.ne.s32.totalorder %s53, %s54
      %p65 = scmp.eq.s32.totalorder %s18, 0
      %p66 = por %p64, %p65
      %p67 = scmp.ne.s32.totalorder %s53, %s54
      %p68 = scmp.eq.s32.totalorder %s19, 1
      %p69 = por %p67, %p68
      %p71 = scmp.ne.s32.totalorder %s54, %s70
      %p72 = scmp.eq.s32.totalorder %s19, 0
      %p73 = por %p71, %p72
      %s74 = ssub.s32 1, %s20
      %s75 = smul.u32 %s22, %s74
      %s76 = ssub.s32 1, %s39
      %s77 = smul.u32 %s31, %s76
      %s78 = ssub.s32 %s75, %s77
      %p79 = scmp.eq.s32.totalorder %s78, 0
      %s81 = sadd.s32 %s80, 1
      %s82 = scalar_select %p79, %s80, %s81
      %p85 = pneg %p79
      %p86 = scmp.eq.s32.totalorder %s13, 1
      %p87 = por %p85, %p86
      %p88 = scmp.ne.s32.totalorder %s80, %s83
      %p89 = scmp.eq.s32.totalorder %s13, 0
      %p90 = por %p88, %p89
      %p91 = scmp.ne.s32.totalorder %s80, %s83
      %p92 = scmp.eq.s32.totalorder %s18, 1
      %p93 = por %p91, %p92
      %p94 = scmp.ne.s32.totalorder %s83, %s84
      %p95 = scmp.eq.s32.totalorder %s18, 0
      %p96 = por %p94, %p95
      %p97 = scmp.ne.s32.totalorder %s83, %s84
      %p98 = scmp.eq.s32.totalorder %s19, 1
      %p99 = por %p97, %p98
      %p101 = scmp.ne.s32.totalorder %s84, %s100
      %p102 = scmp.eq.s32.totalorder %s19, 0
      %p103 = por %p101, %p102
      %s105 = sadd.s32 %s104, 1
      %p108 = scmp.eq.s32.totalorder %s13, 1
      %p109 = scmp.ne.s32.totalorder %s104, %s106
      %p110 = scmp.eq.s32.totalorder %s13, 0
      %p111 = por %p109, %p110
      %p112 = scmp.ne.s32.totalorder %s104, %s106
      %p113 = scmp.eq.s32.totalorder %s18, 1
      %p114 = por %p112, %p113
      %p115 = scmp.ne.s32.totalorder %s106, %s107
      %p116 = scmp.eq.s32.totalorder %s18, 0
      %p117 = por %p115, %p116
      %p118 = scmp.ne.s32.totalorder %s106, %s107
      %p119 = scmp.eq.s32.totalorder %s19, 1
      %p120 = por %p118, %p119
      %p122 = scmp.ne.s32.totalorder %s107, %s121
      %p123 = scmp.eq.s32.totalorder %s19, 0
      %p124 = por %p122, %p123
      %s126 = sadd.s32 %s125, 1
      %p129 = scmp.eq.s32.totalorder %s13, 1
      %p130 = scmp.ne.s32.totalorder %s125, %s127
      %p131 = scmp.eq.s32.totalorder %s13, 0
      %p132 = por %p130, %p131
      %p133 = scmp.ne.s32.totalorder %s125, %s127
      %p134 = scmp.eq.s32.totalorder %s18, 1
      %p135 = por %p133, %p134
      %p136 = scmp.ne.s32.totalorder %s127, %s128
      %p137 = scmp.eq.s32.totalorder %s18, 0
      %p138 = por %p136, %p137
      %p139 = scmp.ne.s32.totalorder %s127, %s128
      %p140 = scmp.eq.s32.totalorder %s19, 1
      %p141 = por %p139, %p140
      %p143 = scmp.ne.s32.totalorder %s128, %s142
      %p144 = scmp.eq.s32.totalorder %s19, 0
      %p145 = por %p143, %p144
      %s146 = smul.u32 %s21, %s20
      %s147 = smul.u32 %s35, %s39
      %s148 = ssub.s32 %s146, %s147
      %p149 = scmp.eq.s32.totalorder %s148, 0
      %s151 = sadd.s32 %s150, 1
      %s152 = scalar_select %p149, %s150, %s151
      %p155 = pneg %p149
      %p156 = scmp.eq.s32.totalorder %s13, 1
      %p157 = por %p155, %p156
      %p158 = scmp.ne.s32.totalorder %s150, %s153
      %p159 = scmp.eq.s32.totalorder %s13, 0
      %p160 = por %p158, %p159
      %p161 = scmp.ne.s32.totalorder %s150, %s153
      %p162 = scmp.eq.s32.totalorder %s18, 1
      %p163 = por %p161, %p162
      %p164 = scmp.ne.s32.totalorder %s153, %s154
      %p165 = scmp.eq.s32.totalorder %s18, 0
      %p166 = por %p164, %p165
      %p167 = scmp.ne.s32.totalorder %s153, %s154
      %p168 = scmp.eq.s32.totalorder %s19, 1
      %p169 = por %p167, %p168
      %p171 = scmp.ne.s32.totalorder %s154, %s170
      %p172 = scmp.eq.s32.totalorder %s19, 0
      %p173 = por %p171, %p172
      %p174 = scmp.le.s32.totalorder 1, %s13
      %p175 = scmp.lt.s32.totalorder %s13, 3
      %p176 = pnand %p174, %p175
      %p177 = pneg %p176
      // Predicated region
      $region9: #{tpu_custom_call.1} parent=5 // pred_check
        _
      $region10: #{tpu_custom_call.1} parent=5 // pred_check_branch
        %179 = sbr.rel (%p176) target = $region12
      $region11: #{tpu_custom_call.1} parent=5 // pred_region
        %s180 = ssub.s32 %s13, 1
        // Predicated region
        $region13: #{tpu_custom_call.1} parent=11 // pred_check
          %p181 = pneg %p117
        $region14: #{tpu_custom_call.1} parent=11 // pred_check_branch
          %183 = sbr.rel (%p181) target = $region16
        $region15: #{tpu_custom_call.1} parent=11 // pred_region
          _
        $region16: #{tpu_custom_call.1} parent=11 // pred_fallthru
          _
        // Predicated region
        $region17: #{tpu_custom_call.1} parent=11 // pred_check
          %p184 = pneg %p138
        $region18: #{tpu_custom_call.1} parent=11 // pred_check_branch
          %186 = sbr.rel (%p184) target = $region20
        $region19: #{tpu_custom_call.1} parent=11 // pred_region
          _
        $region20: #{tpu_custom_call.1} parent=11 // pred_fallthru
          _
      $region12: #{tpu_custom_call.1} parent=5 // pred_fallthru
        _
      %p187 = scmp.lt.s32.totalorder %s13, 2
      // Predicated region
      $region21: #{tpu_custom_call.1} parent=5 // pred_check
        %p188 = pneg %p187
      $region22: #{tpu_custom_call.1} parent=5 // pred_check_branch
        %190 = sbr.rel (%p188) target = $region24
      $region23: #{tpu_custom_call.1} parent=5 // pred_region
        // Predicated region
        $region25: #{tpu_custom_call.1} parent=23 // pred_check
          %p191 = pneg %p60
        $region26: #{tpu_custom_call.1} parent=23 // pred_check_branch
          %193 = sbr.rel (%p191) target = $region28
        $region27: #{tpu_custom_call.1} parent=23 // pred_region
          %s194 = ssub.s32 1, %s20
          %s195 = smul.u32 %s21, %s194
          %s196 = smul.u32 %s22, %s194
          %s197 = smul.u32 64, %s195
          %p198 = scmp.lt.s32.totalorder %s197, 63
          %s199 = scalar_select %p198, %s197, 63
          %p200 = scmp.lt.s32.totalorder %s196, 0
          %s201 = scalar_select %p200, %s196, 0
          %s202 = sadd.s32 %s201, %s199
          %s203 = smul.addr %s202, 4
          %s204 = scalar_lea.vmem %s0, %s203
          %s205 = ssub.s32 1, %s20
          %s206 = smul.u32 %s21, %s205
          %s207 = smul.u32 %s22, %s205
          %s208 = smul.u32 64, %s206
        $region28: #{tpu_custom_call.1} parent=23 // pred_fallthru
          _
        // Predicated region
        $region29: #{tpu_custom_call.1} parent=23 // pred_check
          %p209 = pneg %p90
        $region30: #{tpu_custom_call.1} parent=23 // pred_check_branch
          %211 = sbr.rel (%p209) target = $region32
        $region31: #{tpu_custom_call.1} parent=23 // pred_region
          %s212 = ssub.s32 1, %s20
          %s213 = smul.u32 %s22, %s212
          %s214 = smul.u32 5, %s213
          %p215 = scmp.lt.s32.totalorder %s214, 4
          %s216 = scalar_select %p215, %s214, 4
          %s217 = smul.addr %s216, 4
          %s218 = scalar_lea.vmem %s1, %s217
          %s219 = ssub.s32 1, %s20
          %s220 = smul.u32 %s22, %s219
          %s221 = smul.u32 5, %s220
        $region32: #{tpu_custom_call.1} parent=23 // pred_fallthru
          _
      $region24: #{tpu_custom_call.1} parent=5 // pred_fallthru
        _
      %p222 = scmp.le.s32.totalorder 1, %s13
      %p223 = scmp.lt.s32.totalorder %s13, 3
      %p224 = pnand %p222, %p223
      %p225 = pneg %p224
      // Predicated region
      $region33: #{tpu_custom_call.1} parent=5 // pred_check
        _
      $region34: #{tpu_custom_call.1} parent=5 // pred_check_branch
        %227 = sbr.rel (%p224) target = $region36
      $region35: #{tpu_custom_call.1} parent=5 // pred_region
        %s228 = ssub.s32 %s13, 1
        %s229 = ssub.s32 1, %s23
        %s230 = smul.u32 %s24, %s229
        %s231 = smul.u32 %s25, %s229
        %s232 = smul.u32 64, %s230
        %p233 = scmp.lt.s32.totalorder %s232, 63
        %s234 = scalar_select %p233, %s232, 63
        %p235 = scmp.lt.s32.totalorder %s231, 0
        %s236 = scalar_select %p235, %s231, 0
        %s237 = sadd.s32 %s236, %s234
        %s238 = smul.addr %s237, 4
        %s239 = scalar_lea.vmem %s0, %s238
        %p240 = pneg %p66
        %p241 = pneg %p63
        %s242 = ssub.s32 1, %s23
        %s243 = smul.u32 %s25, %s242
        %s244 = smul.u32 5, %s243
        %p245 = scmp.lt.s32.totalorder %s244, 4
        %s246 = scalar_select %p245, %s244, 4
        %s247 = smul.addr %s246, 4
        %s248 = scalar_lea.vmem %s1, %s247
        %p249 = pneg %p96
        %p250 = pneg %p93
        %p251 = pneg %p117
        %p252 = pneg %p114
        %p253 = pneg %p138
        %p254 = pneg %p135
        %p255 = pneg %p166
        %p256 = pneg %p163
        %s257 = sand.u32 %s153, 1
        %s258 = scalar_lea.sflag [#allocation9], %s257
        %s259 = sand.u32 %s153, 1
        %s260 = smul.addr %s259, 256
        %s261 = scalar_lea.vmem [#allocation8], %s260
        %s262 = ssub.s32 1, %s23
        %s263 = smul.u32 %s24, %s262
        %s264 = smul.u32 %s25, %s262
        %s265 = smul.u32 64, %s263
        %p266 = scmp.lt.s32.totalorder %s265, 63
        %s267 = scalar_select %p266, %s265, 63
        %p268 = scmp.lt.s32.totalorder %s264, 0
        %s269 = scalar_select %p268, %s264, 0
        %s270 = sadd.s32 %s269, %s267
        %s271 = smul.addr %s270, 4
        %s272 = scalar_lea.vmem %s0, %s271
        %s273 = ssub.s32 1, %s23
        %s274 = smul.u32 %s24, %s273
        %s275 = smul.u32 %s25, %s273
        %s276 = smul.u32 64, %s274
        %s277 = ssub.s32 1, %s23
        %s278 = smul.u32 %s25, %s277
        %s279 = smul.u32 5, %s278
        %p280 = scmp.lt.s32.totalorder %s279, 4
        %s281 = scalar_select %p280, %s279, 4
        %s282 = smul.addr %s281, 4
        %s283 = scalar_lea.vmem %s1, %s282
        %s284 = ssub.s32 1, %s23
        %s285 = smul.u32 %s25, %s284
        %s286 = smul.u32 5, %s285
        %s287 = smul.u32 %s24, %s23
        %s288 = smul.u32 64, %s287
        %s290 = smul.u32 %s24, 512
        %p291 = scmp.eq.s32.totalorder %s23, 0
        %p292 = scmp.eq.s32.totalorder %s24, 0
        %p293 = pnand %p291, %p292
        %p294 = pneg %p293
        %p295 = scmp.eq.s32.totalorder %s25, 0
        %p296 = pnand %p294, %p295
        %p297 = pneg %p296
        // Predicated region
        $region37: #{tpu_custom_call.1} parent=35 // pred_check
          _
        $region38: #{tpu_custom_call.1} parent=35 // pred_check_branch
          %299 = sbr.rel (%p296) target = $region40
        $region39: #{tpu_custom_call.1} parent=35 // pred_region
          %300 = vst [vmem:[#allocation4] sm:$0xff] 0.0
          %301 = vst [vmem:[#allocation5] sm:$0xff] 0.0
        $region40: #{tpu_custom_call.1} parent=35 // pred_fallthru
          _
        // Predicated region
        $region41: #{tpu_custom_call.1} parent=35 // pred_check
          %p302 = pneg %p291
        $region42: #{tpu_custom_call.1} parent=35 // pred_check_branch
          %304 = sbr.rel (%p302) target = $region44
        $region43: #{tpu_custom_call.1} parent=35 // pred_region
          %v305 = vld [vmem:[%s272] sm:$0xf]
          %v306 = vld [vmem:[%s272 + $0x4] sm:$0xf]
          %v307 = vld [vmem:[%s272 + $0x8] sm:$0xf]
          %v308 = vld [vmem:[%s272 + $0xc] sm:$0xf]
          %v309 = vld [vmem:[%s272 + $0x10] sm:$0xf]
          %v310 = vld [vmem:[%s272 + $0x14] sm:$0xf]
          %v311 = vld [vmem:[%s272 + $0x18] sm:$0xf]
          %v312 = vld [vmem:[%s272 + $0x1c] sm:$0xf]
          %v313 = vld [vmem:[%s272 + $0x20] sm:$0xf]
          %v314 = vld [vmem:[%s272 + $0x24] sm:$0xf]
          %v315 = vld [vmem:[%s272 + $0x28] sm:$0xf]
          %v316 = vld [vmem:[%s272 + $0x2c] sm:$0xf]
          %v317 = vld [vmem:[%s272 + $0x30] sm:$0xf]
          %v318 = vld [vmem:[%s272 + $0x34] sm:$0xf]
          %v319 = vld [vmem:[%s272 + $0x38] sm:$0xf]
          %v320 = vld [vmem:[%s272 + $0x3c] sm:$0xf]
          %v321 = vld [vmem:[%s272 + $0x40] sm:$0xf]
          %v322 = vld [vmem:[%s272 + $0x44] sm:$0xf]
          %v323 = vld [vmem:[%s272 + $0x48] sm:$0xf]
          %v324 = vld [vmem:[%s272 + $0x4c] sm:$0xf]
          %v325 = vld [vmem:[%s272 + $0x50] sm:$0xf]
          %v326 = vld [vmem:[%s272 + $0x54] sm:$0xf]
          %v327 = vld [vmem:[%s272 + $0x58] sm:$0xf]
          %v328 = vld [vmem:[%s272 + $0x5c] sm:$0xf]
          %v329 = vld [vmem:[%s272 + $0x60] sm:$0xf]
          %v330 = vld [vmem:[%s272 + $0x64] sm:$0xf]
          %v331 = vld [vmem:[%s272 + $0x68] sm:$0xf]
          %v332 = vld [vmem:[%s272 + $0x6c] sm:$0xf]
          %v333 = vld [vmem:[%s272 + $0x70] sm:$0xf]
          %v334 = vld [vmem:[%s272 + $0x74] sm:$0xf]
          %v335 = vld [vmem:[%s272 + $0x78] sm:$0xf]
          %v336 = vld [vmem:[%s272 + $0x7c] sm:$0xf]
          %v337 = vld [vmem:[%s272 + $0x80] sm:$0xf]
          %v338 = vld [vmem:[%s272 + $0x84] sm:$0xf]
          %v339 = vld [vmem:[%s272 + $0x88] sm:$0xf]
          %v340 = vld [vmem:[%s272 + $0x8c] sm:$0xf]
          %v341 = vld [vmem:[%s272 + $0x90] sm:$0xf]
          %v342 = vld [vmem:[%s272 + $0x94] sm:$0xf]
          %v343 = vld [vmem:[%s272 + $0x98] sm:$0xf]
          %v344 = vld [vmem:[%s272 + $0x9c] sm:$0xf]
          %v345 = vld [vmem:[%s272 + $0xa0] sm:$0xf]
          %v346 = vld [vmem:[%s272 + $0xa4] sm:$0xf]
          %v347 = vld [vmem:[%s272 + $0xa8] sm:$0xf]
          %v348 = vld [vmem:[%s272 + $0xac] sm:$0xf]
          %v349 = vld [vmem:[%s272 + $0xb0] sm:$0xf]
          %v350 = vld [vmem:[%s272 + $0xb4] sm:$0xf]
          %v351 = vld [vmem:[%s272 + $0xb8] sm:$0xf]
          %v352 = vld [vmem:[%s272 + $0xbc] sm:$0xf]
          %v353 = vld [vmem:[%s272 + $0xc0] sm:$0xf]
          %v354 = vld [vmem:[%s272 + $0xc4] sm:$0xf]
          %v355 = vld [vmem:[%s272 + $0xc8] sm:$0xf]
          %v356 = vld [vmem:[%s272 + $0xcc] sm:$0xf]
          %v357 = vld [vmem:[%s272 + $0xd0] sm:$0xf]
          %v358 = vld [vmem:[%s272 + $0xd4] sm:$0xf]
          %v359 = vld [vmem:[%s272 + $0xd8] sm:$0xf]
          %v360 = vld [vmem:[%s272 + $0xdc] sm:$0xf]
          %v361 = vld [vmem:[%s272 + $0xe0] sm:$0xf]
          %v362 = vld [vmem:[%s272 + $0xe4] sm:$0xf]
          %v363 = vld [vmem:[%s272 + $0xe8] sm:$0xf]
          %v364 = vld [vmem:[%s272 + $0xec] sm:$0xf]
          %v365 = vld [vmem:[%s272 + $0xf0] sm:$0xf]
          %v366 = vld [vmem:[%s272 + $0xf4] sm:$0xf]
          %v367 = vld [vmem:[%s272 + $0xf8] sm:$0xf]
          %v368 = vld [vmem:[%s272 + $0xfc] sm:$0xf]
          %v369 = vld [vmem:[%s283] sm:$0xf]
          %v370 = vld [vmem:[%s283 + $0x4] sm:$0xf]
          %v371 = vld [vmem:[%s283 + $0x8] sm:$0xf]
          %v372 = vld [vmem:[%s283 + $0xc] sm:$0xf]
          %v373 = vld [vmem:[%s283 + $0x10] sm:$0x3]
          %v438 = vunpack.c.l.b16 %v305
          %v439 = vunpack.c.l.b16 %v306
          %v440 = vunpack.c.l.b16 %v307
          %v441 = vunpack.c.l.b16 %v308
          %v442 = vunpack.c.l.b16 %v309
          %v443 = vunpack.c.l.b16 %v310
          %v444 = vunpack.c.l.b16 %v311
          %v445 = vunpack.c.l.b16 %v312
          %v446 = vunpack.c.l.b16 %v313
          %v447 = vunpack.c.l.b16 %v314
          %v448 = vunpack.c.l.b16 %v315
          %v449 = vunpack.c.l.b16 %v316
          %v450 = vunpack.c.l.b16 %v317
          %v451 = vunpack.c.l.b16 %v318
          %v452 = vunpack.c.l.b16 %v319
          %v453 = vunpack.c.l.b16 %v320
          %v454 = vunpack.c.l.b16 %v321
          %v455 = vunpack.c.l.b16 %v322
          %v456 = vunpack.c.l.b16 %v323
          %v457 = vunpack.c.l.b16 %v324
          %v458 = vunpack.c.l.b16 %v325
          %v459 = vunpack.c.l.b16 %v326
          %v460 = vunpack.c.l.b16 %v327
          %v461 = vunpack.c.l.b16 %v328
          %v462 = vunpack.c.l.b16 %v329
          %v463 = vunpack.c.l.b16 %v330
          %v464 = vunpack.c.l.b16 %v331
          %v465 = vunpack.c.l.b16 %v332
          %v466 = vunpack.c.l.b16 %v333
          %v467 = vunpack.c.l.b16 %v334
          %v468 = vunpack.c.l.b16 %v335
          %v469 = vunpack.c.l.b16 %v336
          %v470 = vunpack.c.l.b16 %v337
          %v471 = vunpack.c.l.b16 %v338
          %v472 = vunpack.c.l.b16 %v339
          %v473 = vunpack.c.l.b16 %v340
          %v474 = vunpack.c.l.b16 %v341
          %v475 = vunpack.c.l.b16 %v342
          %v476 = vunpack.c.l.b16 %v343
          %v477 = vunpack.c.l.b16 %v344
          %v478 = vunpack.c.l.b16 %v345
          %v479 = vunpack.c.l.b16 %v346
          %v480 = vunpack.c.l.b16 %v347
          %v481 = vunpack.c.l.b16 %v348
          %v482 = vunpack.c.l.b16 %v349
          %v483 = vunpack.c.l.b16 %v350
          %v484 = vunpack.c.l.b16 %v351
          %v485 = vunpack.c.l.b16 %v352
          %v486 = vunpack.c.l.b16 %v353
          %v487 = vunpack.c.l.b16 %v354
          %v488 = vunpack.c.l.b16 %v355
          %v489 = vunpack.c.l.b16 %v356
          %v490 = vunpack.c.l.b16 %v357
          %v491 = vunpack.c.l.b16 %v358
          %v492 = vunpack.c.l.b16 %v359
          %v493 = vunpack.c.l.b16 %v360
          %v494 = vunpack.c.l.b16 %v361
          %v495 = vunpack.c.l.b16 %v362
          %v496 = vunpack.c.l.b16 %v363
          %v497 = vunpack.c.l.b16 %v364
          %v498 = vunpack.c.l.b16 %v365
          %v499 = vunpack.c.l.b16 %v366
          %v500 = vunpack.c.l.b16 %v367
          %v501 = vunpack.c.l.b16 %v368
          %v502 = vpack.c.b16 %v439, %v438
          %v503 = vpack.c.b16 %v441, %v440
          %v504 = vpack.c.b16 %v443, %v442
          %v505 = vpack.c.b16 %v445, %v444
          %v506 = vpack.c.b16 %v447, %v446
          %v507 = vpack.c.b16 %v449, %v448
          %v508 = vpack.c.b16 %v451, %v450
          %v509 = vpack.c.b16 %v453, %v452
          %v510 = vpack.c.b16 %v455, %v454
          %v511 = vpack.c.b16 %v457, %v456
          %v512 = vpack.c.b16 %v459, %v458
          %v513 = vpack.c.b16 %v461, %v460
          %v514 = vpack.c.b16 %v463, %v462
          %v515 = vpack.c.b16 %v465, %v464
          %v516 = vpack.c.b16 %v467, %v466
          %v517 = vpack.c.b16 %v469, %v468
          %v518 = vpack.c.b16 %v471, %v470
          %v519 = vpack.c.b16 %v473, %v472
          %v520 = vpack.c.b16 %v475, %v474
          %v521 = vpack.c.b16 %v477, %v476
          %v522 = vpack.c.b16 %v479, %v478
          %v523 = vpack.c.b16 %v481, %v480
          %v524 = vpack.c.b16 %v483, %v482
          %v525 = vpack.c.b16 %v485, %v484
          %v526 = vpack.c.b16 %v487, %v486
          %v527 = vpack.c.b16 %v489, %v488
          %v528 = vpack.c.b16 %v491, %v490
          %v529 = vpack.c.b16 %v493, %v492
          %v530 = vpack.c.b16 %v495, %v494
          %v531 = vpack.c.b16 %v497, %v496
          %v532 = vpack.c.b16 %v499, %v498
          %v533 = vpack.c.b16 %v501, %v500
          %v539 = vunpack.c.l.b16 %v369
          %v540 = vunpack.c.l.b16 %v370
          %v541 = vunpack.c.l.b16 %v371
          %v542 = vunpack.c.l.b16 %v372
          %v543 = vunpack.c.l.b16 %v373
          %v544 = vpack.c.b16 %v540, %v539
          %v545 = vpack.c.b16 %v542, %v541
          %v546 = vpack.c.b16 %v543, %v543
          %vm549 = vcmask 293888
          %v551 = vsel %vm549, %v502, 0
          %v554 = vsel %vm549, %v503, 0
          %v557 = vsel %vm549, %v504, 0
          %v560 = vsel %vm549, %v505, 0
          %v563 = vsel %vm549, %v506, 0
          %v566 = vsel %vm549, %v507, 0
          %v569 = vsel %vm549, %v508, 0
          %v572 = vsel %vm549, %v509, 0
          %v575 = vsel %vm549, %v510, 0
          %v578 = vsel %vm549, %v511, 0
          %v581 = vsel %vm549, %v512, 0
          %v584 = vsel %vm549, %v513, 0
          %v587 = vsel %vm549, %v514, 0
          %v590 = vsel %vm549, %v515, 0
          %v593 = vsel %vm549, %v516, 0
          %v596 = vsel %vm549, %v517, 0
          %v599 = vsel %vm549, %v518, 0
          %v602 = vsel %vm549, %v519, 0
          %v605 = vsel %vm549, %v520, 0
          %v608 = vsel %vm549, %v521, 0
          %v611 = vsel %vm549, %v522, 0
          %v614 = vsel %vm549, %v523, 0
          %v617 = vsel %vm549, %v524, 0
          %v620 = vsel %vm549, %v525, 0
          %v623 = vsel %vm549, %v526, 0
          %v626 = vsel %vm549, %v527, 0
          %v629 = vsel %vm549, %v528, 0
          %v632 = vsel %vm549, %v529, 0
          %v635 = vsel %vm549, %v530, 0
          %v638 = vsel %vm549, %v531, 0
          %v641 = vsel %vm549, %v532, 0
          %v644 = vsel %vm549, %v533, 0
          %vm646 = vcmask 1041408
          %v648 = vsel %vm646, %v546, 0
          %650 = vmatprep.subr.bf16.mxu0 0
          %651 = vmatpush1.bf16.msra.mxu0 %v544
          %652 = vmatprep.subr.bf16.mxu0 0
          %653 = vmatpush1.bf16.msra.mxu0 %v545
          %654 = vmatprep.subr.bf16.mxu0 0
          %655 = vmatpush1.bf16.msra.mxu0 %v648
          %656 = vmatprep.subr.bf16.mxu0 0
          %657 = vmatpush1.bf16.msra.mxu0 0
          %658 = vmatprep.subr.bf16.mxu0 0
          %659 = vmatpush1.bf16.msra.mxu0 0
          %660 = vmatprep.subr.bf16.mxu0 0
          %661 = vmatpush1.bf16.msra.mxu0 0
          %662 = vmatprep.subr.bf16.mxu0 0
          %663 = vmatpush1.bf16.msra.mxu0 0
          %664 = vmatprep.subr.bf16.mxu0 0
          %665 = vmatpush1.bf16.msra.mxu0 0
          %666 = vmatprep.subr.bf16.mxu0 0
          %667 = vmatpush1.bf16.msra.mxu0 0
          %668 = vmatprep.subr.bf16.mxu0 0
          %669 = vmatpush1.bf16.msra.mxu0 0
          %670 = vmatprep.subr.bf16.mxu0 0
          %671 = vmatpush1.bf16.msra.mxu0 0
          %672 = vmatprep.subr.bf16.mxu0 0
          %673 = vmatpush1.bf16.msra.mxu0 0
          %674 = vmatprep.subr.bf16.mxu0 0
          %675 = vmatpush1.bf16.msra.mxu0 0
          %676 = vmatprep.subr.bf16.mxu0 0
          %677 = vmatpush1.bf16.msra.mxu0 0
          %678 = vmatprep.subr.bf16.mxu0 0
          %679 = vmatpush1.bf16.msra.mxu0 0
          %680 = vmatprep.subr.bf16.mxu0 0
          %681 = vmatpush1.bf16.msra.mxu0 0
          %682 = vmatprep.mubr.bf16.mxu0 0
          %683 = vmatmul.mubr.bf16.gmra.mrb[0].mxu0 %v551
          %v684 = vpop.f32.mrb[0].mxu0
          %v685 = vadd.f32 0.0, %v684
          %v686 = vpop.f32.mrb[0].mxu0
          %v687 = vpop.f32.mrb[0].mxu0
          %v688 = vadd.f32 0.0, %v687
          %v689 = vpop.f32.mrb[0].mxu0
          %690 = vmatprep.mubr.bf16.mxu0 0
          %691 = vmatmul.mubr.bf16.gmra.mrb[0].mxu0 %v554
          %v692 = vpop.f32.mrb[0].mxu0
          %v693 = vadd.f32 0.0, %v692
          %v694 = vpop.f32.mrb[0].mxu0
          %v695 = vpop.f32.mrb[0].mxu0
          %v696 = vadd.f32 0.0, %v695
          %v697 = vpop.f32.mrb[0].mxu0
          %698 = vmatprep.mubr.bf16.mxu0 0
          %699 = vmatmul.mubr.bf16.gmra.mrb[0].mxu0 %v557
          %v700 = vpop.f32.mrb[0].mxu0
          %v701 = vadd.f32 0.0, %v700
          %v702 = vpop.f32.mrb[0].mxu0
          %v703 = vpop.f32.mrb[0].mxu0
          %v704 = vadd.f32 0.0, %v703
          %v705 = vpop.f32.mrb[0].mxu0
          %706 = vmatprep.mubr.bf16.mxu0 0
          %707 = vmatmul.mubr.bf16.gmra.mrb[0].mxu0 %v560
          %v708 = vpop.f32.mrb[0].mxu0
          %v709 = vadd.f32 0.0, %v708
          %v710 = vpop.f32.mrb[0].mxu0
          %v711 = vpop.f32.mrb[0].mxu0
          %v712 = vadd.f32 0.0, %v711
          %v713 = vpop.f32.mrb[0].mxu0
          %714 = vmatprep.mubr.bf16.mxu0 0
          %715 = vmatmul.mubr.bf16.gmra.mrb[0].mxu0 %v563
          %v716 = vpop.f32.mrb[0].mxu0
          %v717 = vadd.f32 0.0, %v716
          %v718 = vpop.f32.mrb[0].mxu0
          %v719 = vpop.f32.mrb[0].mxu0
          %v720 = vadd.f32 0.0, %v719
          %v721 = vpop.f32.mrb[0].mxu0
          %722 = vmatprep.mubr.bf16.mxu0 0
          %723 = vmatmul.mubr.bf16.gmra.mrb[0].mxu0 %v566
          %v724 = vpop.f32.mrb[0].mxu0
          %v725 = vadd.f32 0.0, %v724
          %v726 = vpop.f32.mrb[0].mxu0
          %v727 = vpop.f32.mrb[0].mxu0
          %v728 = vadd.f32 0.0, %v727
          %v729 = vpop.f32.mrb[0].mxu0
          %730 = vmatprep.mubr.bf16.mxu0 0
          %731 = vmatmul.mubr.bf16.gmra.mrb[0].mxu0 %v569
          %v732 = vpop.f32.mrb[0].mxu0
          %v733 = vadd.f32 0.0, %v732
          %v734 = vpop.f32.mrb[0].mxu0
          %v735 = vpop.f32.mrb[0].mxu0
          %v736 = vadd.f32 0.0, %v735
          %v737 = vpop.f32.mrb[0].mxu0
          %738 = vmatprep.mubr.bf16.mxu0 0
          %739 = vmatmul.mubr.bf16.gmra.mrb[0].mxu0 %v572
          %v740 = vpop.f32.mrb[0].mxu0
          %v741 = vadd.f32 0.0, %v740
          %v742 = vpop.f32.mrb[0].mxu0
          %v743 = vpop.f32.mrb[0].mxu0
          %v744 = vadd.f32 0.0, %v743
          %v745 = vpop.f32.mrb[0].mxu0
          %746 = vmatprep.mubr.bf16.mxu0 0
          %747 = vmatmul.mubr.bf16.gmra.mrb[0].mxu0 %v575
          %v748 = vpop.f32.mrb[0].mxu0
          %v749 = vadd.f32 0.0, %v748
          %v750 = vpop.f32.mrb[0].mxu0
          %v751 = vpop.f32.mrb[0].mxu0
          %v752 = vadd.f32 0.0, %v751
          %v753 = vpop.f32.mrb[0].mxu0
          %754 = vmatprep.mubr.bf16.mxu0 0
          %755 = vmatmul.mubr.bf16.gmra.mrb[0].mxu0 %v578
          %v756 = vpop.f32.mrb[0].mxu0
          %v757 = vadd.f32 0.0, %v756
          %v758 = vpop.f32.mrb[0].mxu0
          %v759 = vpop.f32.mrb[0].mxu0
          %v760 = vadd.f32 0.0, %v759
          %v761 = vpop.f32.mrb[0].mxu0
          %762 = vmatprep.mubr.bf16.mxu0 0
          %763 = vmatmul.mubr.bf16.gmra.mrb[0].mxu0 %v581
          %v764 = vpop.f32.mrb[0].mxu0
          %v765 = vadd.f32 0.0, %v764
          %v766 = vpop.f32.mrb[0].mxu0
          %v767 = vpop.f32.mrb[0].mxu0
          %v768 = vadd.f32 0.0, %v767
          %v769 = vpop.f32.mrb[0].mxu0
          %770 = vmatprep.mubr.bf16.mxu0 0
          %771 = vmatmul.mubr.bf16.gmra.mrb[0].mxu0 %v584
          %v772 = vpop.f32.mrb[0].mxu0
          %v773 = vadd.f32 0.0, %v772
          %v774 = vpop.f32.mrb[0].mxu0
          %v775 = vpop.f32.mrb[0].mxu0
          %v776 = vadd.f32 0.0, %v775
          %v777 = vpop.f32.mrb[0].mxu0
          %778 = vmatprep.mubr.bf16.mxu0 0
          %779 = vmatmul.mubr.bf16.gmra.mrb[0].mxu0 %v587
          %v780 = vpop.f32.mrb[0].mxu0
          %v781 = vadd.f32 0.0, %v780
          %v782 = vpop.f32.mrb[0].mxu0
          %v783 = vpop.f32.mrb[0].mxu0
          %v784 = vadd.f32 0.0, %v783
          %v785 = vpop.f32.mrb[0].mxu0
          %786 = vmatprep.mubr.bf16.mxu0 0
          %787 = vmatmul.mubr.bf16.gmra.mrb[0].mxu0 %v590
          %v788 = vpop.f32.mrb[0].mxu0
          %v789 = vadd.f32 0.0, %v788
          %v790 = vpop.f32.mrb[0].mxu0
          %v791 = vpop.f32.mrb[0].mxu0
          %v792 = vadd.f32 0.0, %v791
          %v793 = vpop.f32.mrb[0].mxu0
          %794 = vmatprep.mubr.bf16.mxu0 0
          %795 = vmatmul.mubr.bf16.gmra.mrb[0].mxu0 %v593
          %v796 = vpop.f32.mrb[0].mxu0
          %v797 = vadd.f32 0.0, %v796
          %v798 = vpop.f32.mrb[0].mxu0
          %v799 = vpop.f32.mrb[0].mxu0
          %v800 = vadd.f32 0.0, %v799
          %v801 = vpop.f32.mrb[0].mxu0
          %802 = vmatprep.mubr.bf16.mxu0 0
          %803 = vmatmul.mubr.bf16.gmra.mrb[0].mxu0 %v596
          %v804 = vpop.f32.mrb[0].mxu0
          %v805 = vadd.f32 0.0, %v804
          %v806 = vpop.f32.mrb[0].mxu0
          %v807 = vpop.f32.mrb[0].mxu0
          %v808 = vadd.f32 0.0, %v807
          %v809 = vpop.f32.mrb[0].mxu0
          %810 = vmatprep.mubr.bf16.mxu0 0
          %811 = vmatmul.mubr.bf16.gmra.mrb[0].mxu0 %v599
          %v812 = vpop.f32.mrb[0].mxu0
          %v813 = vadd.f32 0.0, %v812
          %v814 = vpop.f32.mrb[0].mxu0
          %v815 = vpop.f32.mrb[0].mxu0
          %v816 = vadd.f32 0.0, %v815
          %v817 = vpop.f32.mrb[0].mxu0
          %818 = vmatprep.mubr.bf16.mxu0 0
          %819 = vmatmul.mubr.bf16.gmra.mrb[0].mxu0 %v602
          %v820 = vpop.f32.mrb[0].mxu0
          %v821 = vadd.f32 0.0, %v820
          %v822 = vpop.f32.mrb[0].mxu0
          %v823 = vpop.f32.mrb[0].mxu0
          %v824 = vadd.f32 0.0, %v823
          %v825 = vpop.f32.mrb[0].mxu0
          %826 = vmatprep.mubr.bf16.mxu0 0
          %827 = vmatmul.mubr.bf16.gmra.mrb[0].mxu0 %v605
          %v828 = vpop.f32.mrb[0].mxu0
          %v829 = vadd.f32 0.0, %v828
          %v830 = vpop.f32.mrb[0].mxu0
          %v831 = vpop.f32.mrb[0].mxu0
          %v832 = vadd.f32 0.0, %v831
          %v833 = vpop.f32.mrb[0].mxu0
          %834 = vmatprep.mubr.bf16.mxu0 0
          %835 = vmatmul.mubr.bf16.gmra.mrb[0].mxu0 %v608
          %v836 = vpop.f32.mrb[0].mxu0
          %v837 = vadd.f32 0.0, %v836
          %v838 = vpop.f32.mrb[0].mxu0
          %v839 = vpop.f32.mrb[0].mxu0
          %v840 = vadd.f32 0.0, %v839
          %v841 = vpop.f32.mrb[0].mxu0
          %842 = vmatprep.mubr.bf16.mxu0 0
          %843 = vmatmul.mubr.bf16.gmra.mrb[0].mxu0 %v611
          %v844 = vpop.f32.mrb[0].mxu0
          %v845 = vadd.f32 0.0, %v844
          %v846 = vpop.f32.mrb[0].mxu0
          %v847 = vpop.f32.mrb[0].mxu0
          %v848 = vadd.f32 0.0, %v847
          %v849 = vpop.f32.mrb[0].mxu0
          %850 = vmatprep.mubr.bf16.mxu0 0
          %851 = vmatmul.mubr.bf16.gmra.mrb[0].mxu0 %v614
          %v852 = vpop.f32.mrb[0].mxu0
          %v853 = vadd.f32 0.0, %v852
          %v854 = vpop.f32.mrb[0].mxu0
          %v855 = vpop.f32.mrb[0].mxu0
          %v856 = vadd.f32 0.0, %v855
          %v857 = vpop.f32.mrb[0].mxu0
          %858 = vmatprep.mubr.bf16.mxu0 0
          %859 = vmatmul.mubr.bf16.gmra.mrb[0].mxu0 %v617
          %v860 = vpop.f32.mrb[0].mxu0
          %v861 = vadd.f32 0.0, %v860
          %v862 = vpop.f32.mrb[0].mxu0
          %v863 = vpop.f32.mrb[0].mxu0
          %v864 = vadd.f32 0.0, %v863
          %v865 = vpop.f32.mrb[0].mxu0
          %866 = vmatprep.mubr.bf16.mxu0 0
          %867 = vmatmul.mubr.bf16.gmra.mrb[0].mxu0 %v620
          %v868 = vpop.f32.mrb[0].mxu0
          %v869 = vadd.f32 0.0, %v868
          %v870 = vpop.f32.mrb[0].mxu0
          %v871 = vpop.f32.mrb[0].mxu0
          %v872 = vadd.f32 0.0, %v871
          %v873 = vpop.f32.mrb[0].mxu0
          %874 = vmatprep.mubr.bf16.mxu0 0
          %875 = vmatmul.mubr.bf16.gmra.mrb[0].mxu0 %v623
          %v876 = vpop.f32.mrb[0].mxu0
          %v877 = vadd.f32 0.0, %v876
          %v878 = vpop.f32.mrb[0].mxu0
          %v879 = vpop.f32.mrb[0].mxu0
          %v880 = vadd.f32 0.0, %v879
          %v881 = vpop.f32.mrb[0].mxu0
          %882 = vmatprep.mubr.bf16.mxu0 0
          %883 = vmatmul.mubr.bf16.gmra.mrb[0].mxu0 %v626
          %v884 = vpop.f32.mrb[0].mxu0
          %v885 = vadd.f32 0.0, %v884
          %v886 = vpop.f32.mrb[0].mxu0
          %v887 = vpop.f32.mrb[0].mxu0
          %v888 = vadd.f32 0.0, %v887
          %v889 = vpop.f32.mrb[0].mxu0
          %890 = vmatprep.mubr.bf16.mxu0 0
          %891 = vmatmul.mubr.bf16.gmra.mrb[0].mxu0 %v629
          %v892 = vpop.f32.mrb[0].mxu0
          %v893 = vadd.f32 0.0, %v892
          %v894 = vpop.f32.mrb[0].mxu0
          %v895 = vpop.f32.mrb[0].mxu0
          %v896 = vadd.f32 0.0, %v895
          %v897 = vpop.f32.mrb[0].mxu0
          %898 = vmatprep.mubr.bf16.mxu0 0
          %899 = vmatmul.mubr.bf16.gmra.mrb[0].mxu0 %v632
          %v900 = vpop.f32.mrb[0].mxu0
          %v901 = vadd.f32 0.0, %v900
          %v902 = vpop.f32.mrb[0].mxu0
          %v903 = vpop.f32.mrb[0].mxu0
          %v904 = vadd.f32 0.0, %v903
          %v905 = vpop.f32.mrb[0].mxu0
          %906 = vmatprep.mubr.bf16.mxu0 0
          %907 = vmatmul.mubr.bf16.gmra.mrb[0].mxu0 %v635
          %v908 = vpop.f32.mrb[0].mxu0
          %v909 = vadd.f32 0.0, %v908
          %v910 = vpop.f32.mrb[0].mxu0
          %v911 = vpop.f32.mrb[0].mxu0
          %v912 = vadd.f32 0.0, %v911
          %v913 = vpop.f32.mrb[0].mxu0
          %914 = vmatprep.mubr.bf16.mxu0 0
          %915 = vmatmul.mubr.bf16.gmra.mrb[0].mxu0 %v638
          %v916 = vpop.f32.mrb[0].mxu0
          %v917 = vadd.f32 0.0, %v916
          %v918 = vpop.f32.mrb[0].mxu0
          %v919 = vpop.f32.mrb[0].mxu0
          %v920 = vadd.f32 0.0, %v919
          %v921 = vpop.f32.mrb[0].mxu0
          %922 = vmatprep.mubr.bf16.mxu0 0
          %923 = vmatmul.mubr.bf16.gmra.mrb[0].mxu0 %v641
          %v924 = vpop.f32.mrb[0].mxu0
          %v925 = vadd.f32 0.0, %v924
          %v926 = vpop.f32.mrb[0].mxu0
          %v927 = vpop.f32.mrb[0].mxu0
          %v928 = vadd.f32 0.0, %v927
          %v929 = vpop.f32.mrb[0].mxu0
          %930 = vmatprep.mubr.bf16.mxu0 0
          %931 = vmatmul.mubr.bf16.gmra.mrb[0].mxu0 %v644
          %v932 = vpop.f32.mrb[0].mxu0
          %v933 = vadd.f32 0.0, %v932
          %v934 = vpop.f32.mrb[0].mxu0
          %v935 = vpop.f32.mrb[0].mxu0
          %v936 = vadd.f32 0.0, %v935
          %v937 = vpop.f32.mrb[0].mxu0
          %938 = vdwg.mxu0
          %v939 = vpack.c.bf16 %v688, %v685
          %v940 = vpack.c.bf16 %v696, %v693
          %v941 = vpack.c.bf16 %v704, %v701
          %v942 = vpack.c.bf16 %v712, %v709
          %v943 = vpack.c.bf16 %v720, %v717
          %v944 = vpack.c.bf16 %v728, %v725
          %v945 = vpack.c.bf16 %v736, %v733
          %v946 = vpack.c.bf16 %v744, %v741
          %v947 = vpack.c.bf16 %v752, %v749
          %v948 = vpack.c.bf16 %v760, %v757
          %v949 = vpack.c.bf16 %v768, %v765
          %v950 = vpack.c.bf16 %v776, %v773
          %v951 = vpack.c.bf16 %v784, %v781
          %v952 = vpack.c.bf16 %v792, %v789
          %v953 = vpack.c.bf16 %v800, %v797
          %v954 = vpack.c.bf16 %v808, %v805
          %v955 = vpack.c.bf16 %v816, %v813
          %v956 = vpack.c.bf16 %v824, %v821
          %v957 = vpack.c.bf16 %v832, %v829
          %v958 = vpack.c.bf16 %v840, %v837
          %v959 = vpack.c.bf16 %v848, %v845
          %v960 = vpack.c.bf16 %v856, %v853
          %v961 = vpack.c.bf16 %v864, %v861
          %v962 = vpack.c.bf16 %v872, %v869
          %v963 = vpack.c.bf16 %v880, %v877
          %v964 = vpack.c.bf16 %v888, %v885
          %v965 = vpack.c.bf16 %v896, %v893
          %v966 = vpack.c.bf16 %v904, %v901
          %v967 = vpack.c.bf16 %v912, %v909
          %v968 = vpack.c.bf16 %v920, %v917
          %v969 = vpack.c.bf16 %v928, %v925
          %v970 = vpack.c.bf16 %v936, %v933
          %s971 = sshra.s32 %s290, 4
          %s972 = sand.u32 %s290, 15
          %s973 = smul.addr %s971, 8
          %s974 = scalar_lea.vmem [#allocation2], %s973
          %975 = vst [vmem:[%s974] sm:$0xff] %v939
          %976 = vst [vmem:[%s974 + $0x8] sm:$0xff] %v940
          %977 = vst [vmem:[%s974 + $0x10] sm:$0xff] %v941
          %978 = vst [vmem:[%s974 + $0x18] sm:$0xff] %v942
          %979 = vst [vmem:[%s974 + $0x20] sm:$0xff] %v943
          %980 = vst [vmem:[%s974 + $0x28] sm:$0xff] %v944
          %981 = vst [vmem:[%s974 + $0x30] sm:$0xff] %v945
          %982 = vst [vmem:[%s974 + $0x38] sm:$0xff] %v946
          %983 = vst [vmem:[%s974 + $0x40] sm:$0xff] %v947
          %984 = vst [vmem:[%s974 + $0x48] sm:$0xff] %v948
          %985 = vst [vmem:[%s974 + $0x50] sm:$0xff] %v949
          %986 = vst [vmem:[%s974 + $0x58] sm:$0xff] %v950
          %987 = vst [vmem:[%s974 + $0x60] sm:$0xff] %v951
          %988 = vst [vmem:[%s974 + $0x68] sm:$0xff] %v952
          %989 = vst [vmem:[%s974 + $0x70] sm:$0xff] %v953
          %990 = vst [vmem:[%s974 + $0x78] sm:$0xff] %v954
          %991 = vst [vmem:[%s974 + $0x80] sm:$0xff] %v955
          %992 = vst [vmem:[%s974 + $0x88] sm:$0xff] %v956
          %993 = vst [vmem:[%s974 + $0x90] sm:$0xff] %v957
          %994 = vst [vmem:[%s974 + $0x98] sm:$0xff] %v958
          %995 = vst [vmem:[%s974 + $0xa0] sm:$0xff] %v959
          %996 = vst [vmem:[%s974 + $0xa8] sm:$0xff] %v960
          %997 = vst [vmem:[%s974 + $0xb0] sm:$0xff] %v961
          %998 = vst [vmem:[%s974 + $0xb8] sm:$0xff] %v962
          %999 = vst [vmem:[%s974 + $0xc0] sm:$0xff] %v963
          %1000 = vst [vmem:[%s974 + $0xc8] sm:$0xff] %v964
          %1001 = vst [vmem:[%s974 + $0xd0] sm:$0xff] %v965
          %1002 = vst [vmem:[%s974 + $0xd8] sm:$0xff] %v966
          %1003 = vst [vmem:[%s974 + $0xe0] sm:$0xff] %v967
          %1004 = vst [vmem:[%s974 + $0xe8] sm:$0xff] %v968
          %1005 = vst [vmem:[%s974 + $0xf0] sm:$0xff] %v969
          %1006 = vst [vmem:[%s974 + $0xf8] sm:$0xff] %v970
          %v1007 = vld [vmem:[#allocation4] sm:$0xff]
          %v1008 = vadd.f32 %v685, %v688
          %v1009 = vadd.f32 %v1008, %v693
          %v1010 = vadd.f32 %v1009, %v696
          %v1011 = vadd.f32 %v1010, %v701
          %v1012 = vadd.f32 %v1011, %v704
          %v1013 = vadd.f32 %v1012, %v709
          %v1014 = vadd.f32 %v1013, %v712
          %v1015 = vadd.f32 %v1014, %v717
          %v1016 = vadd.f32 %v1015, %v720
          %v1017 = vadd.f32 %v1016, %v725
          %v1018 = vadd.f32 %v1017, %v728
          %v1019 = vadd.f32 %v1018, %v733
          %v1020 = vadd.f32 %v1019, %v736
          %v1021 = vadd.f32 %v1020, %v741
          %v1022 = vadd.f32 %v1021, %v744
          %v1023 = vadd.f32 %v1022, %v749
          %v1024 = vadd.f32 %v1023, %v752
          %v1025 = vadd.f32 %v1024, %v757
          %v1026 = vadd.f32 %v1025, %v760
          %v1027 = vadd.f32 %v1026, %v765
          %v1028 = vadd.f32 %v1027, %v768
          %v1029 = vadd.f32 %v1028, %v773
          %v1030 = vadd.f32 %v1029, %v776
          %v1031 = vadd.f32 %v1030, %v781
          %v1032 = vadd.f32 %v1031, %v784
          %v1033 = vadd.f32 %v1032, %v789
          %v1034 = vadd.f32 %v1033, %v792
          %v1035 = vadd.f32 %v1034, %v797
          %v1036 = vadd.f32 %v1035, %v800
          %v1037 = vadd.f32 %v1036, %v805
          %v1038 = vadd.f32 %v1037, %v808
          %v1039 = vadd.f32 %v1038, %v813
          %v1040 = vadd.f32 %v1039, %v816
          %v1041 = vadd.f32 %v1040, %v821
          %v1042 = vadd.f32 %v1041, %v824
          %v1043 = vadd.f32 %v1042, %v829
          %v1044 = vadd.f32 %v1043, %v832
          %v1045 = vadd.f32 %v1044, %v837
          %v1046 = vadd.f32 %v1045, %v840
          %v1047 = vadd.f32 %v1046, %v845
          %v1048 = vadd.f32 %v1047, %v848
          %v1049 = vadd.f32 %v1048, %v853
          %v1050 = vadd.f32 %v1049, %v856
          %v1051 = vadd.f32 %v1050, %v861
          %v1052 = vadd.f32 %v1051, %v864
          %v1053 = vadd.f32 %v1052, %v869
          %v1054 = vadd.f32 %v1053, %v872
          %v1055 = vadd.f32 %v1054, %v877
          %v1056 = vadd.f32 %v1055, %v880
          %v1057 = vadd.f32 %v1056, %v885
          %v1058 = vadd.f32 %v1057, %v888
          %v1059 = vadd.f32 %v1058, %v893
          %v1060 = vadd.f32 %v1059, %v896
          %v1061 = vadd.f32 %v1060, %v901
          %v1062 = vadd.f32 %v1061, %v904
          %v1063 = vadd.f32 %v1062, %v909
          %v1064 = vadd.f32 %v1063, %v912
          %v1065 = vadd.f32 %v1064, %v917
          %v1066 = vadd.f32 %v1065, %v920
          %v1067 = vadd.f32 %v1066, %v925
          %v1068 = vadd.f32 %v1067, %v928
          %v1069 = vadd.f32 %v1068, %v933
          %v1070 = vadd.f32 %v1069, %v936
          %v1071 = vadd.f32 %v1007, %v1070
          %1072 = vst [vmem:[#allocation4] sm:$0xff] %v1071
          %v1073 = vld [vmem:[#allocation5] sm:$0xff]
          %v1074 = vmul.f32 %v685, %v685
          %v1075 = vmul.f32 %v688, %v688
          %v1076 = vmul.f32 %v693, %v693
          %v1077 = vmul.f32 %v696, %v696
          %v1078 = vmul.f32 %v701, %v701
          %v1079 = vmul.f32 %v704, %v704
          %v1080 = vmul.f32 %v709, %v709
          %v1081 = vmul.f32 %v712, %v712
          %v1082 = vmul.f32 %v717, %v717
          %v1083 = vmul.f32 %v720, %v720
          %v1084 = vmul.f32 %v725, %v725
          %v1085 = vmul.f32 %v728, %v728
          %v1086 = vmul.f32 %v733, %v733
          %v1087 = vmul.f32 %v736, %v736
          %v1088 = vmul.f32 %v741, %v741
          %v1089 = vmul.f32 %v744, %v744
          %v1090 = vmul.f32 %v749, %v749
          %v1091 = vmul.f32 %v752, %v752
          %v1092 = vmul.f32 %v757, %v757
          %v1093 = vmul.f32 %v760, %v760
          %v1094 = vmul.f32 %v765, %v765
          %v1095 = vmul.f32 %v768, %v768
          %v1096 = vmul.f32 %v773, %v773
          %v1097 = vmul.f32 %v776, %v776
          %v1098 = vmul.f32 %v781, %v781
          %v1099 = vmul.f32 %v784, %v784
          %v1100 = vmul.f32 %v789, %v789
          %v1101 = vmul.f32 %v792, %v792
          %v1102 = vmul.f32 %v797, %v797
          %v1103 = vmul.f32 %v800, %v800
          %v1104 = vmul.f32 %v805, %v805
          %v1105 = vmul.f32 %v808, %v808
          %v1106 = vmul.f32 %v813, %v813
          %v1107 = vmul.f32 %v816, %v816
          %v1108 = vmul.f32 %v821, %v821
          %v1109 = vmul.f32 %v824, %v824
          %v1110 = vmul.f32 %v829, %v829
          %v1111 = vmul.f32 %v832, %v832
          %v1112 = vmul.f32 %v837, %v837
          %v1113 = vmul.f32 %v840, %v840
          %v1114 = vmul.f32 %v845, %v845
          %v1115 = vmul.f32 %v848, %v848
          %v1116 = vmul.f32 %v853, %v853
          %v1117 = vmul.f32 %v856, %v856
          %v1118 = vmul.f32 %v861, %v861
          %v1119 = vmul.f32 %v864, %v864
          %v1120 = vmul.f32 %v869, %v869
          %v1121 = vmul.f32 %v872, %v872
          %v1122 = vmul.f32 %v877, %v877
          %v1123 = vmul.f32 %v880, %v880
          %v1124 = vmul.f32 %v885, %v885
          %v1125 = vmul.f32 %v888, %v888
          %v1126 = vmul.f32 %v893, %v893
          %v1127 = vmul.f32 %v896, %v896
          %v1128 = vmul.f32 %v901, %v901
          %v1129 = vmul.f32 %v904, %v904
          %v1130 = vmul.f32 %v909, %v909
          %v1131 = vmul.f32 %v912, %v912
          %v1132 = vmul.f32 %v917, %v917
          %v1133 = vmul.f32 %v920, %v920
          %v1134 = vmul.f32 %v925, %v925
          %v1135 = vmul.f32 %v928, %v928
          %v1136 = vmul.f32 %v933, %v933
          %v1137 = vmul.f32 %v936, %v936
          %v1138 = vadd.f32 %v1074, %v1075
          %v1139 = vadd.f32 %v1138, %v1076
          %v1140 = vadd.f32 %v1139, %v1077
          %v1141 = vadd.f32 %v1140, %v1078
          %v1142 = vadd.f32 %v1141, %v1079
          %v1143 = vadd.f32 %v1142, %v1080
          %v1144 = vadd.f32 %v1143, %v1081
          %v1145 = vadd.f32 %v1144, %v1082
          %v1146 = vadd.f32 %v1145, %v1083
          %v1147 = vadd.f32 %v1146, %v1084
          %v1148 = vadd.f32 %v1147, %v1085
          %v1149 = vadd.f32 %v1148, %v1086
          %v1150 = vadd.f32 %v1149, %v1087
          %v1151 = vadd.f32 %v1150, %v1088
          %v1152 = vadd.f32 %v1151, %v1089
          %v1153 = vadd.f32 %v1152, %v1090
          %v1154 = vadd.f32 %v1153, %v1091
          %v1155 = vadd.f32 %v1154, %v1092
          %v1156 = vadd.f32 %v1155, %v1093
          %v1157 = vadd.f32 %v1156, %v1094
          %v1158 = vadd.f32 %v1157, %v1095
          %v1159 = vadd.f32 %v1158, %v1096
          %v1160 = vadd.f32 %v1159, %v1097
          %v1161 = vadd.f32 %v1160, %v1098
          %v1162 = vadd.f32 %v1161, %v1099
          %v1163 = vadd.f32 %v1162, %v1100
          %v1164 = vadd.f32 %v1163, %v1101
          %v1165 = vadd.f32 %v1164, %v1102
          %v1166 = vadd.f32 %v1165, %v1103
          %v1167 = vadd.f32 %v1166, %v1104
          %v1168 = vadd.f32 %v1167, %v1105
          %v1169 = vadd.f32 %v1168, %v1106
          %v1170 = vadd.f32 %v1169, %v1107
          %v1171 = vadd.f32 %v1170, %v1108
          %v1172 = vadd.f32 %v1171, %v1109
          %v1173 = vadd.f32 %v1172, %v1110
          %v1174 = vadd.f32 %v1173, %v1111
          %v1175 = vadd.f32 %v1174, %v1112
          %v1176 = vadd.f32 %v1175, %v1113
          %v1177 = vadd.f32 %v1176, %v1114
          %v1178 = vadd.f32 %v1177, %v1115
          %v1179 = vadd.f32 %v1178, %v1116
          %v1180 = vadd.f32 %v1179, %v1117
          %v1181 = vadd.f32 %v1180, %v1118
          %v1182 = vadd.f32 %v1181, %v1119
          %v1183 = vadd.f32 %v1182, %v1120
          %v1184 = vadd.f32 %v1183, %v1121
          %v1185 = vadd.f32 %v1184, %v1122
          %v1186 = vadd.f32 %v1185, %v1123
          %v1187 = vadd.f32 %v1186, %v1124
          %v1188 = vadd.f32 %v1187, %v1125
          %v1189 = vadd.f32 %v1188, %v1126
          %v1190 = vadd.f32 %v1189, %v1127
          %v1191 = vadd.f32 %v1190, %v1128
          %v1192 = vadd.f32 %v1191, %v1129
          %v1193 = vadd.f32 %v1192, %v1130
          %v1194 = vadd.f32 %v1193, %v1131
          %v1195 = vadd.f32 %v1194, %v1132
          %v1196 = vadd.f32 %v1195, %v1133
          %v1197 = vadd.f32 %v1196, %v1134
          %v1198 = vadd.f32 %v1197, %v1135
          %v1199 = vadd.f32 %v1198, %v1136
          %v1200 = vadd.f32 %v1199, %v1137
          %v1201 = vadd.f32 %v1073, %v1200
          %1202 = vst [vmem:[#allocation5] sm:$0xff] %v1201
        $region44: #{tpu_custom_call.1} parent=35 // pred_fallthru
          _
        %p1203 = scmp.eq.s32.totalorder %s23, 1
        %p1204 = pnand %p1203, %p292
        %p1205 = pneg %p1204
        %p1206 = pnand %p1205, %p295
        %p1207 = pneg %p1206
        // Predicated region
        $region45: #{tpu_custom_call.1} parent=35 // pred_check
          _
        $region46: #{tpu_custom_call.1} parent=35 // pred_check_branch
          %1209 = sbr.rel (%p1206) target = $region48
        $region47: #{tpu_custom_call.1} parent=35 // pred_region
          %v1210 = vld [vmem:[#allocation4] sm:$0xff]
          %v1211 = vrot.slane %v1210, 4
          %v1212 = vadd.f32 %v1210, %v1211
          %v1213 = vrot.slane %v1212, 2
          %v1214 = vadd.f32 %v1212, %v1213
          %v1215 = vrot.slane %v1214, 1
          %v1216 = vadd.f32 %v1214, %v1215
          %v1217 = vld [vmem:[#allocation5] sm:$0xff]
          %v1218 = vrot.slane %v1217, 4
          %v1219 = vadd.f32 %v1217, %v1218
          %v1220 = vrot.slane %v1219, 2
          %v1221 = vadd.f32 %v1219, %v1220
          %v1222 = vrot.slane %v1221, 1
          %v1223 = vadd.f32 %v1221, %v1222
          %v1224 = vmul.f32 %v1216, 0.001953125
          %v1225 = vmul.f32 %v1223, 0.001953125
          %v1226 = vmul.f32 %v1224, %v1224
          %v1227 = vsub.f32 %v1225, %v1226
          %v1228 = vmax.f32 %v1227, 0.0
          %v1229 = vadd.f32 %v1228, 1e-05
          %v1230 = vrsqrt.pop %v1229
          %v1231 = vld [vmem:[%s2] sm:$0x1]
          %v1232 = vmul.f32 %v1231, %v1230
          %1233 = vst [vmem:[#allocation6] sm:$0x1] %v1232
          %v1234 = vld [vmem:[%s3] sm:$0x1]
          %v1235 = vmul.f32 %v1224, %v1232
          %v1236 = vsub.f32 %v1234, %v1235
          %1237 = vst [vmem:[#allocation7] sm:$0x1] %v1236
        $region48: #{tpu_custom_call.1} parent=35 // pred_fallthru
          _
        %p1238 = pnand %p1203, %p295
        %p1239 = pneg %p1238
        // Predicated region
        $region49: #{tpu_custom_call.1} parent=35 // pred_check
          _
        $region50: #{tpu_custom_call.1} parent=35 // pred_check_branch
          %1241 = sbr.rel (%p1238) target = $region52
        $region51: #{tpu_custom_call.1} parent=35 // pred_region
          %s1242 = sshra.s32 %s290, 4
          %s1243 = sand.u32 %s290, 15
          %s1244 = smul.addr %s1242, 8
          %s1245 = scalar_lea.vmem [#allocation2], %s1244
          %v1246 = vld [vmem:[%s1245] sm:$0xff]
          %v1247 = vld [vmem:[%s1245 + $0x8] sm:$0xff]
          %v1248 = vld [vmem:[%s1245 + $0x10] sm:$0xff]
          %v1249 = vld [vmem:[%s1245 + $0x18] sm:$0xff]
          %v1250 = vld [vmem:[%s1245 + $0x20] sm:$0xff]
          %v1251 = vld [vmem:[%s1245 + $0x28] sm:$0xff]
          %v1252 = vld [vmem:[%s1245 + $0x30] sm:$0xff]
          %v1253 = vld [vmem:[%s1245 + $0x38] sm:$0xff]
          %v1254 = vld [vmem:[%s1245 + $0x40] sm:$0xff]
          %v1255 = vld [vmem:[%s1245 + $0x48] sm:$0xff]
          %v1256 = vld [vmem:[%s1245 + $0x50] sm:$0xff]
          %v1257 = vld [vmem:[%s1245 + $0x58] sm:$0xff]
          %v1258 = vld [vmem:[%s1245 + $0x60] sm:$0xff]
          %v1259 = vld [vmem:[%s1245 + $0x68] sm:$0xff]
          %v1260 = vld [vmem:[%s1245 + $0x70] sm:$0xff]
          %v1261 = vld [vmem:[%s1245 + $0x78] sm:$0xff]
          %v1262 = vld [vmem:[%s1245 + $0x80] sm:$0xff]
          %v1263 = vld [vmem:[%s1245 + $0x88] sm:$0xff]
          %v1264 = vld [vmem:[%s1245 + $0x90] sm:$0xff]
          %v1265 = vld [vmem:[%s1245 + $0x98] sm:$0xff]
          %v1266 = vld [vmem:[%s1245 + $0xa0] sm:$0xff]
          %v1267 = vld [vmem:[%s1245 + $0xa8] sm:$0xff]
          %v1268 = vld [vmem:[%s1245 + $0xb0] sm:$0xff]
          %v1269 = vld [vmem:[%s1245 + $0xb8] sm:$0xff]
          %v1270 = vld [vmem:[%s1245 + $0xc0] sm:$0xff]
          %v1271 = vld [vmem:[%s1245 + $0xc8] sm:$0xff]
          %v1272 = vld [vmem:[%s1245 + $0xd0] sm:$0xff]
          %v1273 = vld [vmem:[%s1245 + $0xd8] sm:$0xff]
          %v1274 = vld [vmem:[%s1245 + $0xe0] sm:$0xff]
          %v1275 = vld [vmem:[%s1245 + $0xe8] sm:$0xff]
          %v1276 = vld [vmem:[%s1245 + $0xf0] sm:$0xff]
          %v1277 = vld [vmem:[%s1245 + $0xf8] sm:$0xff]
          %v1278 = vunpack.c.l.bf16 %v1246
          %v1279 = vunpack.c.h.bf16 %v1246
          %v1280 = vunpack.c.l.bf16 %v1247
          %v1281 = vunpack.c.h.bf16 %v1247
          %v1282 = vunpack.c.l.bf16 %v1248
          %v1283 = vunpack.c.h.bf16 %v1248
          %v1284 = vunpack.c.l.bf16 %v1249
          %v1285 = vunpack.c.h.bf16 %v1249
          %v1286 = vunpack.c.l.bf16 %v1250
          %v1287 = vunpack.c.h.bf16 %v1250
          %v1288 = vunpack.c.l.bf16 %v1251
          %v1289 = vunpack.c.h.bf16 %v1251
          %v1290 = vunpack.c.l.bf16 %v1252
          %v1291 = vunpack.c.h.bf16 %v1252
          %v1292 = vunpack.c.l.bf16 %v1253
          %v1293 = vunpack.c.h.bf16 %v1253
          %v1294 = vunpack.c.l.bf16 %v1254
          %v1295 = vunpack.c.h.bf16 %v1254
          %v1296 = vunpack.c.l.bf16 %v1255
          %v1297 = vunpack.c.h.bf16 %v1255
          %v1298 = vunpack.c.l.bf16 %v1256
          %v1299 = vunpack.c.h.bf16 %v1256
          %v1300 = vunpack.c.l.bf16 %v1257
          %v1301 = vunpack.c.h.bf16 %v1257
          %v1302 = vunpack.c.l.bf16 %v1258
          %v1303 = vunpack.c.h.bf16 %v1258
          %v1304 = vunpack.c.l.bf16 %v1259
          %v1305 = vunpack.c.h.bf16 %v1259
          %v1306 = vunpack.c.l.bf16 %v1260
          %v1307 = vunpack.c.h.bf16 %v1260
          %v1308 = vunpack.c.l.bf16 %v1261
          %v1309 = vunpack.c.h.bf16 %v1261
          %v1310 = vunpack.c.l.bf16 %v1262
          %v1311 = vunpack.c.h.bf16 %v1262
          %v1312 = vunpack.c.l.bf16 %v1263
          %v1313 = vunpack.c.h.bf16 %v1263
          %v1314 = vunpack.c.l.bf16 %v1264
          %v1315 = vunpack.c.h.bf16 %v1264
          %v1316 = vunpack.c.l.bf16 %v1265
          %v1317 = vunpack.c.h.bf16 %v1265
          %v1318 = vunpack.c.l.bf16 %v1266
          %v1319 = vunpack.c.h.bf16 %v1266
          %v1320 = vunpack.c.l.bf16 %v1267
          %v1321 = vunpack.c.h.bf16 %v1267
          %v1322 = vunpack.c.l.bf16 %v1268
          %v1323 = vunpack.c.h.bf16 %v1268
          %v1324 = vunpack.c.l.bf16 %v1269
          %v1325 = vunpack.c.h.bf16 %v1269
          %v1326 = vunpack.c.l.bf16 %v1270
          %v1327 = vunpack.c.h.bf16 %v1270
          %v1328 = vunpack.c.l.bf16 %v1271
          %v1329 = vunpack.c.h.bf16 %v1271
          %v1330 = vunpack.c.l.bf16 %v1272
          %v1331 = vunpack.c.h.bf16 %v1272
          %v1332 = vunpack.c.l.bf16 %v1273
          %v1333 = vunpack.c.h.bf16 %v1273
          %v1334 = vunpack.c.l.bf16 %v1274
          %v1335 = vunpack.c.h.bf16 %v1274
          %v1336 = vunpack.c.l.bf16 %v1275
          %v1337 = vunpack.c.h.bf16 %v1275
          %v1338 = vunpack.c.l.bf16 %v1276
          %v1339 = vunpack.c.h.bf16 %v1276
          %v1340 = vunpack.c.l.bf16 %v1277
          %v1341 = vunpack.c.h.bf16 %v1277
          %v1342 = vld [vmem:[#allocation6] sm:$0x1]
          %v1344 = vlaneseq
          %v1345 = vshrl.u32 %v1344, 7
          %v1346 = vsub.s32 0, %v1345
          %v1347 = vrot.slane %v1342, %v1346
          %v1349 = vmul.f32 %v1278, %v1347
          %v1350 = vmul.f32 %v1279, %v1347
          %v1351 = vmul.f32 %v1280, %v1347
          %v1352 = vmul.f32 %v1281, %v1347
          %v1353 = vmul.f32 %v1282, %v1347
          %v1354 = vmul.f32 %v1283, %v1347
          %v1355 = vmul.f32 %v1284, %v1347
          %v1356 = vmul.f32 %v1285, %v1347
          %v1357 = vmul.f32 %v1286, %v1347
          %v1358 = vmul.f32 %v1287, %v1347
          %v1359 = vmul.f32 %v1288, %v1347
          %v1360 = vmul.f32 %v1289, %v1347
          %v1361 = vmul.f32 %v1290, %v1347
          %v1362 = vmul.f32 %v1291, %v1347
          %v1363 = vmul.f32 %v1292, %v1347
          %v1364 = vmul.f32 %v1293, %v1347
          %v1365 = vmul.f32 %v1294, %v1347
          %v1366 = vmul.f32 %v1295, %v1347
          %v1367 = vmul.f32 %v1296, %v1347
          %v1368 = vmul.f32 %v1297, %v1347
          %v1369 = vmul.f32 %v1298, %v1347
          %v1370 = vmul.f32 %v1299, %v1347
          %v1371 = vmul.f32 %v1300, %v1347
          %v1372 = vmul.f32 %v1301, %v1347
          %v1373 = vmul.f32 %v1302, %v1347
          %v1374 = vmul.f32 %v1303, %v1347
          %v1375 = vmul.f32 %v1304, %v1347
          %v1376 = vmul.f32 %v1305, %v1347
          %v1377 = vmul.f32 %v1306, %v1347
          %v1378 = vmul.f32 %v1307, %v1347
          %v1379 = vmul.f32 %v1308, %v1347
          %v1380 = vmul.f32 %v1309, %v1347
          %v1381 = vmul.f32 %v1310, %v1347
          %v1382 = vmul.f32 %v1311, %v1347
          %v1383 = vmul.f32 %v1312, %v1347
          %v1384 = vmul.f32 %v1313, %v1347
          %v1385 = vmul.f32 %v1314, %v1347
          %v1386 = vmul.f32 %v1315, %v1347
          %v1387 = vmul.f32 %v1316, %v1347
          %v1388 = vmul.f32 %v1317, %v1347
          %v1389 = vmul.f32 %v1318, %v1347
          %v1390 = vmul.f32 %v1319, %v1347
          %v1391 = vmul.f32 %v1320, %v1347
          %v1392 = vmul.f32 %v1321, %v1347
          %v1393 = vmul.f32 %v1322, %v1347
          %v1394 = vmul.f32 %v1323, %v1347
          %v1395 = vmul.f32 %v1324, %v1347
          %v1396 = vmul.f32 %v1325, %v1347
          %v1397 = vmul.f32 %v1326, %v1347
          %v1398 = vmul.f32 %v1327, %v1347
          %v1399 = vmul.f32 %v1328, %v1347
          %v1400 = vmul.f32 %v1329, %v1347
          %v1401 = vmul.f32 %v1330, %v1347
          %v1402 = vmul.f32 %v1331, %v1347
          %v1403 = vmul.f32 %v1332, %v1347
          %v1404 = vmul.f32 %v1333, %v1347
          %v1405 = vmul.f32 %v1334, %v1347
          %v1406 = vmul.f32 %v1335, %v1347
          %v1407 = vmul.f32 %v1336, %v1347
          %v1408 = vmul.f32 %v1337, %v1347
          %v1409 = vmul.f32 %v1338, %v1347
          %v1410 = vmul.f32 %v1339, %v1347
          %v1411 = vmul.f32 %v1340, %v1347
          %v1412 = vmul.f32 %v1341, %v1347
          %v1413 = vld [vmem:[#allocation7] sm:$0x1]
          %v1415 = vlaneseq
          %v1416 = vshrl.u32 %v1415, 7
          %v1417 = vsub.s32 0, %v1416
          %v1418 = vrot.slane %v1413, %v1417
          %v1420 = vadd.f32 %v1349, %v1418
          %v1421 = vadd.f32 %v1350, %v1418
          %v1422 = vadd.f32 %v1351, %v1418
          %v1423 = vadd.f32 %v1352, %v1418
          %v1424 = vadd.f32 %v1353, %v1418
          %v1425 = vadd.f32 %v1354, %v1418
          %v1426 = vadd.f32 %v1355, %v1418
          %v1427 = vadd.f32 %v1356, %v1418
          %v1428 = vadd.f32 %v1357, %v1418
          %v1429 = vadd.f32 %v1358, %v1418
          %v1430 = vadd.f32 %v1359, %v1418
          %v1431 = vadd.f32 %v1360, %v1418
          %v1432 = vadd.f32 %v1361, %v1418
          %v1433 = vadd.f32 %v1362, %v1418
          %v1434 = vadd.f32 %v1363, %v1418
          %v1435 = vadd.f32 %v1364, %v1418
          %v1436 = vadd.f32 %v1365, %v1418
          %v1437 = vadd.f32 %v1366, %v1418
          %v1438 = vadd.f32 %v1367, %v1418
          %v1439 = vadd.f32 %v1368, %v1418
          %v1440 = vadd.f32 %v1369, %v1418
          %v1441 = vadd.f32 %v1370, %v1418
          %v1442 = vadd.f32 %v1371, %v1418
          %v1443 = vadd.f32 %v1372, %v1418
          %v1444 = vadd.f32 %v1373, %v1418
          %v1445 = vadd.f32 %v1374, %v1418
          %v1446 = vadd.f32 %v1375, %v1418
          %v1447 = vadd.f32 %v1376, %v1418
          %v1448 = vadd.f32 %v1377, %v1418
          %v1449 = vadd.f32 %v1378, %v1418
          %v1450 = vadd.f32 %v1379, %v1418
          %v1451 = vadd.f32 %v1380, %v1418
          %v1452 = vadd.f32 %v1381, %v1418
          %v1453 = vadd.f32 %v1382, %v1418
          %v1454 = vadd.f32 %v1383, %v1418
          %v1455 = vadd.f32 %v1384, %v1418
          %v1456 = vadd.f32 %v1385, %v1418
          %v1457 = vadd.f32 %v1386, %v1418
          %v1458 = vadd.f32 %v1387, %v1418
          %v1459 = vadd.f32 %v1388, %v1418
          %v1460 = vadd.f32 %v1389, %v1418
          %v1461 = vadd.f32 %v1390, %v1418
          %v1462 = vadd.f32 %v1391, %v1418
          %v1463 = vadd.f32 %v1392, %v1418
          %v1464 = vadd.f32 %v1393, %v1418
          %v1465 = vadd.f32 %v1394, %v1418
          %v1466 = vadd.f32 %v1395, %v1418
          %v1467 = vadd.f32 %v1396, %v1418
          %v1468 = vadd.f32 %v1397, %v1418
          %v1469 = vadd.f32 %v1398, %v1418
          %v1470 = vadd.f32 %v1399, %v1418
          %v1471 = vadd.f32 %v1400, %v1418
          %v1472 = vadd.f32 %v1401, %v1418
          %v1473 = vadd.f32 %v1402, %v1418
          %v1474 = vadd.f32 %v1403, %v1418
          %v1475 = vadd.f32 %v1404, %v1418
          %v1476 = vadd.f32 %v1405, %v1418
          %v1477 = vadd.f32 %v1406, %v1418
          %v1478 = vadd.f32 %v1407, %v1418
          %v1479 = vadd.f32 %v1408, %v1418
          %v1480 = vadd.f32 %v1409, %v1418
          %v1481 = vadd.f32 %v1410, %v1418
          %v1482 = vadd.f32 %v1411, %v1418
          %v1483 = vadd.f32 %v1412, %v1418
          %v1484 = vmax.f32 %v1420, 0.0
          %v1485 = vmax.f32 %v1421, 0.0
          %v1486 = vmax.f32 %v1422, 0.0
          %v1487 = vmax.f32 %v1423, 0.0
          %v1488 = vmax.f32 %v1424, 0.0
          %v1489 = vmax.f32 %v1425, 0.0
          %v1490 = vmax.f32 %v1426, 0.0
          %v1491 = vmax.f32 %v1427, 0.0
          %v1492 = vmax.f32 %v1428, 0.0
          %v1493 = vmax.f32 %v1429, 0.0
          %v1494 = vmax.f32 %v1430, 0.0
          %v1495 = vmax.f32 %v1431, 0.0
          %v1496 = vmax.f32 %v1432, 0.0
          %v1497 = vmax.f32 %v1433, 0.0
          %v1498 = vmax.f32 %v1434, 0.0
          %v1499 = vmax.f32 %v1435, 0.0
          %v1500 = vmax.f32 %v1436, 0.0
          %v1501 = vmax.f32 %v1437, 0.0
          %v1502 = vmax.f32 %v1438, 0.0
          %v1503 = vmax.f32 %v1439, 0.0
          %v1504 = vmax.f32 %v1440, 0.0
          %v1505 = vmax.f32 %v1441, 0.0
          %v1506 = vmax.f32 %v1442, 0.0
          %v1507 = vmax.f32 %v1443, 0.0
          %v1508 = vmax.f32 %v1444, 0.0
          %v1509 = vmax.f32 %v1445, 0.0
          %v1510 = vmax.f32 %v1446, 0.0
          %v1511 = vmax.f32 %v1447, 0.0
          %v1512 = vmax.f32 %v1448, 0.0
          %v1513 = vmax.f32 %v1449, 0.0
          %v1514 = vmax.f32 %v1450, 0.0
          %v1515 = vmax.f32 %v1451, 0.0
          %v1516 = vmax.f32 %v1452, 0.0
          %v1517 = vmax.f32 %v1453, 0.0
          %v1518 = vmax.f32 %v1454, 0.0
          %v1519 = vmax.f32 %v1455, 0.0
          %v1520 = vmax.f32 %v1456, 0.0
          %v1521 = vmax.f32 %v1457, 0.0
          %v1522 = vmax.f32 %v1458, 0.0
          %v1523 = vmax.f32 %v1459, 0.0
          %v1524 = vmax.f32 %v1460, 0.0
          %v1525 = vmax.f32 %v1461, 0.0
          %v1526 = vmax.f32 %v1462, 0.0
          %v1527 = vmax.f32 %v1463, 0.0
          %v1528 = vmax.f32 %v1464, 0.0
          %v1529 = vmax.f32 %v1465, 0.0
          %v1530 = vmax.f32 %v1466, 0.0
          %v1531 = vmax.f32 %v1467, 0.0
          %v1532 = vmax.f32 %v1468, 0.0
          %v1533 = vmax.f32 %v1469, 0.0
          %v1534 = vmax.f32 %v1470, 0.0
          %v1535 = vmax.f32 %v1471, 0.0
          %v1536 = vmax.f32 %v1472, 0.0
          %v1537 = vmax.f32 %v1473, 0.0
          %v1538 = vmax.f32 %v1474, 0.0
          %v1539 = vmax.f32 %v1475, 0.0
          %v1540 = vmax.f32 %v1476, 0.0
          %v1541 = vmax.f32 %v1477, 0.0
          %v1542 = vmax.f32 %v1478, 0.0
          %v1543 = vmax.f32 %v1479, 0.0
          %v1544 = vmax.f32 %v1480, 0.0
          %v1545 = vmax.f32 %v1481, 0.0
          %v1546 = vmax.f32 %v1482, 0.0
          %v1547 = vmax.f32 %v1483, 0.0
          %v1548 = vpack.c.bf16 %v1485, %v1484
          %v1549 = vpack.c.bf16 %v1487, %v1486
          %v1550 = vpack.c.bf16 %v1489, %v1488
          %v1551 = vpack.c.bf16 %v1491, %v1490
          %v1552 = vpack.c.bf16 %v1493, %v1492
          %v1553 = vpack.c.bf16 %v1495, %v1494
          %v1554 = vpack.c.bf16 %v1497, %v1496
          %v1555 = vpack.c.bf16 %v1499, %v1498
          %v1556 = vpack.c.bf16 %v1501, %v1500
          %v1557 = vpack.c.bf16 %v1503, %v1502
          %v1558 = vpack.c.bf16 %v1505, %v1504
          %v1559 = vpack.c.bf16 %v1507, %v1506
          %v1560 = vpack.c.bf16 %v1509, %v1508
          %v1561 = vpack.c.bf16 %v1511, %v1510
          %v1562 = vpack.c.bf16 %v1513, %v1512
          %v1563 = vpack.c.bf16 %v1515, %v1514
          %v1564 = vpack.c.bf16 %v1517, %v1516
          %v1565 = vpack.c.bf16 %v1519, %v1518
          %v1566 = vpack.c.bf16 %v1521, %v1520
          %v1567 = vpack.c.bf16 %v1523, %v1522
          %v1568 = vpack.c.bf16 %v1525, %v1524
          %v1569 = vpack.c.bf16 %v1527, %v1526
          %v1570 = vpack.c.bf16 %v1529, %v1528
          %v1571 = vpack.c.bf16 %v1531, %v1530
          %v1572 = vpack.c.bf16 %v1533, %v1532
          %v1573 = vpack.c.bf16 %v1535, %v1534
          %v1574 = vpack.c.bf16 %v1537, %v1536
          %v1575 = vpack.c.bf16 %v1539, %v1538
          %v1576 = vpack.c.bf16 %v1541, %v1540
          %v1577 = vpack.c.bf16 %v1543, %v1542
          %v1578 = vpack.c.bf16 %v1545, %v1544
          %v1579 = vpack.c.bf16 %v1547, %v1546
          %v1612 = vunpack.c.l.b16 %v1548
          %v1613 = vunpack.c.h.b16 %v1548
          %v1614 = vunpack.c.l.b16 %v1549
          %v1615 = vunpack.c.h.b16 %v1549
          %v1616 = vunpack.c.l.b16 %v1550
          %v1617 = vunpack.c.h.b16 %v1550
          %v1618 = vunpack.c.l.b16 %v1551
          %v1619 = vunpack.c.h.b16 %v1551
          %v1620 = vunpack.c.l.b16 %v1552
          %v1621 = vunpack.c.h.b16 %v1552
          %v1622 = vunpack.c.l.b16 %v1553
          %v1623 = vunpack.c.h.b16 %v1553
          %v1624 = vunpack.c.l.b16 %v1554
          %v1625 = vunpack.c.h.b16 %v1554
          %v1626 = vunpack.c.l.b16 %v1555
          %v1627 = vunpack.c.h.b16 %v1555
          %v1628 = vunpack.c.l.b16 %v1556
          %v1629 = vunpack.c.h.b16 %v1556
          %v1630 = vunpack.c.l.b16 %v1557
          %v1631 = vunpack.c.h.b16 %v1557
          %v1632 = vunpack.c.l.b16 %v1558
          %v1633 = vunpack.c.h.b16 %v1558
          %v1634 = vunpack.c.l.b16 %v1559
          %v1635 = vunpack.c.h.b16 %v1559
          %v1636 = vunpack.c.l.b16 %v1560
          %v1637 = vunpack.c.h.b16 %v1560
          %v1638 = vunpack.c.l.b16 %v1561
          %v1639 = vunpack.c.h.b16 %v1561
          %v1640 = vunpack.c.l.b16 %v1562
          %v1641 = vunpack.c.h.b16 %v1562
          %v1642 = vunpack.c.l.b16 %v1563
          %v1643 = vunpack.c.h.b16 %v1563
          %v1644 = vunpack.c.l.b16 %v1564
          %v1645 = vunpack.c.h.b16 %v1564
          %v1646 = vunpack.c.l.b16 %v1565
          %v1647 = vunpack.c.h.b16 %v1565
          %v1648 = vunpack.c.l.b16 %v1566
          %v1649 = vunpack.c.h.b16 %v1566
          %v1650 = vunpack.c.l.b16 %v1567
          %v1651 = vunpack.c.h.b16 %v1567
          %v1652 = vunpack.c.l.b16 %v1568
          %v1653 = vunpack.c.h.b16 %v1568
          %v1654 = vunpack.c.l.b16 %v1569
          %v1655 = vunpack.c.h.b16 %v1569
          %v1656 = vunpack.c.l.b16 %v1570
          %v1657 = vunpack.c.h.b16 %v1570
          %v1658 = vunpack.c.l.b16 %v1571
          %v1659 = vunpack.c.h.b16 %v1571
          %v1660 = vunpack.c.l.b16 %v1572
          %v1661 = vunpack.c.h.b16 %v1572
          %v1662 = vunpack.c.l.b16 %v1573
          %v1663 = vunpack.c.h.b16 %v1573
          %v1664 = vunpack.c.l.b16 %v1574
          %v1665 = vunpack.c.h.b16 %v1574
          %v1666 = vunpack.c.l.b16 %v1575
          %v1667 = vunpack.c.h.b16 %v1575
          %v1668 = vunpack.c.l.b16 %v1576
          %v1669 = vunpack.c.h.b16 %v1576
          %v1670 = vunpack.c.l.b16 %v1577
          %v1671 = vunpack.c.h.b16 %v1577
          %v1672 = vunpack.c.l.b16 %v1578
          %v1673 = vunpack.c.h.b16 %v1578
          %v1674 = vunpack.c.l.b16 %v1579
          %v1675 = vunpack.c.h.b16 %v1579
          %v1676 = vpack.c.b16 %v1612, %v1612
          %v1677 = vpack.c.b16 %v1613, %v1613
          %v1678 = vpack.c.b16 %v1614, %v1614
          %v1679 = vpack.c.b16 %v1615, %v1615
          %v1680 = vpack.c.b16 %v1616, %v1616
          %v1681 = vpack.c.b16 %v1617, %v1617
          %v1682 = vpack.c.b16 %v1618, %v1618
          %v1683 = vpack.c.b16 %v1619, %v1619
          %v1684 = vpack.c.b16 %v1620, %v1620
          %v1685 = vpack.c.b16 %v1621, %v1621
          %v1686 = vpack.c.b16 %v1622, %v1622
          %v1687 = vpack.c.b16 %v1623, %v1623
          %v1688 = vpack.c.b16 %v1624, %v1624
          %v1689 = vpack.c.b16 %v1625, %v1625
          %v1690 = vpack.c.b16 %v1626, %v1626
          %v1691 = vpack.c.b16 %v1627, %v1627
          %v1692 = vpack.c.b16 %v1628, %v1628
          %v1693 = vpack.c.b16 %v1629, %v1629
          %v1694 = vpack.c.b16 %v1630, %v1630
          %v1695 = vpack.c.b16 %v1631, %v1631
          %v1696 = vpack.c.b16 %v1632, %v1632
          %v1697 = vpack.c.b16 %v1633, %v1633
          %v1698 = vpack.c.b16 %v1634, %v1634
          %v1699 = vpack.c.b16 %v1635, %v1635
          %v1700 = vpack.c.b16 %v1636, %v1636
          %v1701 = vpack.c.b16 %v1637, %v1637
          %v1702 = vpack.c.b16 %v1638, %v1638
          %v1703 = vpack.c.b16 %v1639, %v1639
          %v1704 = vpack.c.b16 %v1640, %v1640
          %v1705 = vpack.c.b16 %v1641, %v1641
          %v1706 = vpack.c.b16 %v1642, %v1642
          %v1707 = vpack.c.b16 %v1643, %v1643
          %v1708 = vpack.c.b16 %v1644, %v1644
          %v1709 = vpack.c.b16 %v1645, %v1645
          %v1710 = vpack.c.b16 %v1646, %v1646
          %v1711 = vpack.c.b16 %v1647, %v1647
          %v1712 = vpack.c.b16 %v1648, %v1648
          %v1713 = vpack.c.b16 %v1649, %v1649
          %v1714 = vpack.c.b16 %v1650, %v1650
          %v1715 = vpack.c.b16 %v1651, %v1651
          %v1716 = vpack.c.b16 %v1652, %v1652
          %v1717 = vpack.c.b16 %v1653, %v1653
          %v1718 = vpack.c.b16 %v1654, %v1654
          %v1719 = vpack.c.b16 %v1655, %v1655
          %v1720 = vpack.c.b16 %v1656, %v1656
          %v1721 = vpack.c.b16 %v1657, %v1657
          %v1722 = vpack.c.b16 %v1658, %v1658
          %v1723 = vpack.c.b16 %v1659, %v1659
          %v1724 = vpack.c.b16 %v1660, %v1660
          %v1725 = vpack.c.b16 %v1661, %v1661
          %v1726 = vpack.c.b16 %v1662, %v1662
          %v1727 = vpack.c.b16 %v1663, %v1663
          %v1728 = vpack.c.b16 %v1664, %v1664
          %v1729 = vpack.c.b16 %v1665, %v1665
          %v1730 = vpack.c.b16 %v1666, %v1666
          %v1731 = vpack.c.b16 %v1667, %v1667
          %v1732 = vpack.c.b16 %v1668, %v1668
          %v1733 = vpack.c.b16 %v1669, %v1669
          %v1734 = vpack.c.b16 %v1670, %v1670
          %v1735 = vpack.c.b16 %v1671, %v1671
          %v1736 = vpack.c.b16 %v1672, %v1672
          %v1737 = vpack.c.b16 %v1673, %v1673
          %v1738 = vpack.c.b16 %v1674, %v1674
          %v1739 = vpack.c.b16 %v1675, %v1675
          %1804 = vst [vmem:[%s261] sm:$0xf] %v1676
          %1805 = vst [vmem:[%s261 + $0x4] sm:$0xf] %v1677
          %1806 = vst [vmem:[%s261 + $0x8] sm:$0xf] %v1678
          %1807 = vst [vmem:[%s261 + $0xc] sm:$0xf] %v1679
          %1808 = vst [vmem:[%s261 + $0x10] sm:$0xf] %v1680
          %1809 = vst [vmem:[%s261 + $0x14] sm:$0xf] %v1681
          %1810 = vst [vmem:[%s261 + $0x18] sm:$0xf] %v1682
          %1811 = vst [vmem:[%s261 + $0x1c] sm:$0xf] %v1683
          %1812 = vst [vmem:[%s261 + $0x20] sm:$0xf] %v1684
          %1813 = vst [vmem:[%s261 + $0x24] sm:$0xf] %v1685
          %1814 = vst [vmem:[%s261 + $0x28] sm:$0xf] %v1686
          %1815 = vst [vmem:[%s261 + $0x2c] sm:$0xf] %v1687
          %1816 = vst [vmem:[%s261 + $0x30] sm:$0xf] %v1688
          %1817 = vst [vmem:[%s261 + $0x34] sm:$0xf] %v1689
          %1818 = vst [vmem:[%s261 + $0x38] sm:$0xf] %v1690
          %1819 = vst [vmem:[%s261 + $0x3c] sm:$0xf] %v1691
          %1820 = vst [vmem:[%s261 + $0x40] sm:$0xf] %v1692
          %1821 = vst [vmem:[%s261 + $0x44] sm:$0xf] %v1693
          %1822 = vst [vmem:[%s261 + $0x48] sm:$0xf] %v1694
          %1823 = vst [vmem:[%s261 + $0x4c] sm:$0xf] %v1695
          %1824 = vst [vmem:[%s261 + $0x50] sm:$0xf] %v1696
          %1825 = vst [vmem:[%s261 + $0x54] sm:$0xf] %v1697
          %1826 = vst [vmem:[%s261 + $0x58] sm:$0xf] %v1698
          %1827 = vst [vmem:[%s261 + $0x5c] sm:$0xf] %v1699
          %1828 = vst [vmem:[%s261 + $0x60] sm:$0xf] %v1700
          %1829 = vst [vmem:[%s261 + $0x64] sm:$0xf] %v1701
          %1830 = vst [vmem:[%s261 + $0x68] sm:$0xf] %v1702
          %1831 = vst [vmem:[%s261 + $0x6c] sm:$0xf] %v1703
          %1832 = vst [vmem:[%s261 + $0x70] sm:$0xf] %v1704
          %1833 = vst [vmem:[%s261 + $0x74] sm:$0xf] %v1705
          %1834 = vst [vmem:[%s261 + $0x78] sm:$0xf] %v1706
          %1835 = vst [vmem:[%s261 + $0x7c] sm:$0xf] %v1707
          %1836 = vst [vmem:[%s261 + $0x80] sm:$0xf] %v1708
          %1837 = vst [vmem:[%s261 + $0x84] sm:$0xf] %v1709
          %1838 = vst [vmem:[%s261 + $0x88] sm:$0xf] %v1710
          %1839 = vst [vmem:[%s261 + $0x8c] sm:$0xf] %v1711
          %1840 = vst [vmem:[%s261 + $0x90] sm:$0xf] %v1712
          %1841 = vst [vmem:[%s261 + $0x94] sm:$0xf] %v1713
          %1842 = vst [vmem:[%s261 + $0x98] sm:$0xf] %v1714
          %1843 = vst [vmem:[%s261 + $0x9c] sm:$0xf] %v1715
          %1844 = vst [vmem:[%s261 + $0xa0] sm:$0xf] %v1716
          %1845 = vst [vmem:[%s261 + $0xa4] sm:$0xf] %v1717
          %1846 = vst [vmem:[%s261 + $0xa8] sm:$0xf] %v1718
          %1847 = vst [vmem:[%s261 + $0xac] sm:$0xf] %v1719
          %1848 = vst [vmem:[%s261 + $0xb0] sm:$0xf] %v1720
          %1849 = vst [vmem:[%s261 + $0xb4] sm:$0xf] %v1721
          %1850 = vst [vmem:[%s261 + $0xb8] sm:$0xf] %v1722
          %1851 = vst [vmem:[%s261 + $0xbc] sm:$0xf] %v1723
          %1852 = vst [vmem:[%s261 + $0xc0] sm:$0xf] %v1724
          %1853 = vst [vmem:[%s261 + $0xc4] sm:$0xf] %v1725
          %1854 = vst [vmem:[%s261 + $0xc8] sm:$0xf] %v1726
          %1855 = vst [vmem:[%s261 + $0xcc] sm:$0xf] %v1727
          %1856 = vst [vmem:[%s261 + $0xd0] sm:$0xf] %v1728
          %1857 = vst [vmem:[%s261 + $0xd4] sm:$0xf] %v1729
          %1858 = vst [vmem:[%s261 + $0xd8] sm:$0xf] %v1730
          %1859 = vst [vmem:[%s261 + $0xdc] sm:$0xf] %v1731
          %1860 = vst [vmem:[%s261 + $0xe0] sm:$0xf] %v1732
          %1861 = vst [vmem:[%s261 + $0xe4] sm:$0xf] %v1733
          %1862 = vst [vmem:[%s261 + $0xe8] sm:$0xf] %v1734
          %1863 = vst [vmem:[%s261 + $0xec] sm:$0xf] %v1735
          %1864 = vst [vmem:[%s261 + $0xf0] sm:$0xf] %v1736
          %1865 = vst [vmem:[%s261 + $0xf4] sm:$0xf] %v1737
          %1866 = vst [vmem:[%s261 + $0xf8] sm:$0xf] %v1738
          %1867 = vst [vmem:[%s261 + $0xfc] sm:$0xf] %v1739
        $region52: #{tpu_custom_call.1} parent=35 // pred_fallthru
          _
        %s1868 = sand.u32 %s153, 1
        %s1869 = scalar_lea.sflag [#allocation9], %s1868
        %s1870 = sand.u32 %s153, 1
        %s1871 = smul.addr %s1870, 256
        %s1872 = scalar_lea.vmem [#allocation8], %s1871
        // Predicated region
        $region53: #{tpu_custom_call.1} parent=35 // pred_check
          %p1873 = pneg %p163
        $region54: #{tpu_custom_call.1} parent=35 // pred_check_branch
          %1875 = sbr.rel (%p1873) target = $region56
        $region55: #{tpu_custom_call.1} parent=35 // pred_region
          %s1876 = smul.u32 %s24, %s23
          %s1877 = smul.u32 64, %s1876
          %s1879 = ssub.s32 4096, 4096
          %1880 = vsyncadd %s1869, %s1879
          %s1881 = smul.addr %s1877, 64
          %s1882 = scalar_lea.hbm %s4, %s1881
          %s1883 = sshll.u32 %s1872, 4
          %s1884 = int_to_ptr.vmem [resolvable:$true] %s1883
          %1889 = dma.vmem_to_hbm [thread:$0]  %s1884, 4096, %s1882, %s1869, 64, 64, 4
        $region56: #{tpu_custom_call.1} parent=35 // pred_fallthru
          _
      $region36: #{tpu_custom_call.1} parent=5 // pred_fallthru
        _
      %p1890 = scmp.le.s32.totalorder 2, %s13
      // Predicated region
      $region57: #{tpu_custom_call.1} parent=5 // pred_check
        %p1891 = pneg %p1890
      $region58: #{tpu_custom_call.1} parent=5 // pred_check_branch
        %1893 = sbr.rel (%p1891) target = $region60
      $region59: #{tpu_custom_call.1} parent=5 // pred_region
        %s1894 = ssub.s32 %s13, 2
        // Predicated region
        $region61: #{tpu_custom_call.1} parent=59 // pred_check
          %p1895 = pneg %p169
        $region62: #{tpu_custom_call.1} parent=59 // pred_check_branch
          %1897 = sbr.rel (%p1895) target = $region64
        $region63: #{tpu_custom_call.1} parent=59 // pred_region
          %s1898 = sand.u32 %s154, 1
          %s1899 = scalar_lea.sflag [#allocation9], %s1898
          %s1900 = sand.u32 %s154, 1
          %s1901 = smul.addr %s1900, 256
          %s1902 = scalar_lea.vmem [#allocation8], %s1901
          %1903 = dma.done %s1899, 4096
        $region64: #{tpu_custom_call.1} parent=59 // pred_fallthru
          _
      $region60: #{tpu_custom_call.1} parent=5 // pred_fallthru
        _
    $region6: #{tpu_custom_call.1} parent=1 // loop_footer
      %s17 = sadd.s32 1, %s13
    $region7: #{tpu_custom_call.1} parent=1 // loop_footer_branch
      %12 = sbr.rel target = $region3
    $region8: #{tpu_custom_call.1} parent=1 // loop_exit
      _
    %1904 = vsyncpa [#allocation9], 1
    %s1905 = scalar_lea.sflag [#allocation9], 1
    %1906 = vsyncpa %s1905, 1

</llo_original>
